<compile_context>
chip_gen: v7x
topology: tpu7x:2x2x1
jax: 0.10.0
libtpu: 0.0.40
codegen_flags: <defaults>
</compile_context>

<pallas_src>
import numpy as np
import jax
import jax.numpy as jnp
from jax.experimental import pallas as pl
from jax.experimental.pallas import tpu as pltpu

# Reference runs at 'highest' matmul precision (ground truth); the kernel overrides every
# dot with precision=DEFAULT (single-pass bf16 MXU) as requested by the perf review.
jax.config.update("jax_default_matmul_precision", "highest")

# ----------------------------- problem sizes --------------------------------
N_NODES = 16
N_EDGES = 40
N_GRAPHS = 2
F_IN = 8
HIDDEN = 32
TOWERS = HIDDEN // 4          # 8
F_OUT = HIDDEN // TOWERS      # 4
TF = TOWERS * F_IN            # 64
EDGE_DIM = 1
H2 = HIDDEN // 2
H4 = HIDDEN // 4
EPS = 1e-5

_DEFAULT = jax.lax.Precision.DEFAULT


# ------------------------------ Pallas kernel -------------------------------
def make_pna_kernel(avg_log: float):
    avg_log = float(avg_log)

    def dot(a, b):
        # single-pass bf16 MXU matmul, f32 accumulation
        return jnp.dot(a, b, precision=_DEFAULT, preferred_element_type=jnp.float32)

    def kernel(x_ref, s1h_ref, d1h_en_ref, d1h_ne_ref, fill3_ref, ea_ref,
               we_fold_ref, be_fold_ref,
               wi_ref, wj_ref, bpre_ref,
               wpx_ref, wall_ref, bpost_ref,
               wlin_ref, blin_ref, gamma_ref, beta_ref,
               b1h_ref, w1_ref, b1_ref, w2_ref, b2_ref, w3_ref, b3_ref,
               out_ref):
        x = x_ref[...]                        # (N, Fin)
        s1h = s1h_ref[...]                    # (E, N)  one-hot of src
        d1h_en = d1h_en_ref[...]              # (E, N)  one-hot of dst
        d1h_ne = d1h_ne_ref[...]              # (N, E)  one-hot of dst (transposed)

        # ---- pre-NN projections at node granularity (N rows instead of E rows) ----
        xWi = dot(x, wi_ref[...])             # (N, TF)
        xWj = dot(x, wj_ref[...])             # (N, TF)

        # ---- folded edge encoder: pure VPU ----
        edge_term = ea_ref[...] * we_fold_ref[...] + be_fold_ref[...]   # (E, TF)

        # ---- messages via one-hot gathers of the projections ----
        msgs = dot(d1h_en, xWi) + dot(s1h, xWj) + edge_term + bpre_ref[...]  # (E, TF)

        # ---- degrees ----
        count = jnp.sum(d1h_ne, axis=1, keepdims=True)   # (N, 1)
        deg = jnp.maximum(count, 1.0)
        inv_deg = 1.0 / deg

        # ---- fused sum + sum-of-squares aggregation (one 128-lane-wide matmul) ----
        M2 = jnp.concatenate([msgs, msgs * msgs], axis=-1)   # (E, 2*TF) = (E, 128)
        SS = dot(d1h_ne, M2)                                  # (N, 128)
        mean = SS[:, :TF] * inv_deg
        mean_sq = SS[:, TF:] * inv_deg
        std = jnp.sqrt(jnp.maximum(mean_sq - mean * mean, 0.0) + 1e-5)

        # ---- min / max via one shared arithmetic fill (no rank-3 where-selects) ----
        fill = fill3_ref[...]                                 # (N, E, 1): 0 if edge->node else 1e30
        minv = jnp.min(msgs[None, :, :] + fill, axis=1)       # (N, TF)
        maxv = jnp.max(msgs[None, :, :] - fill, axis=1)       # (N, TF)
        has = count > 0.0
        minv = jnp.where(has, minv, 0.0)
        maxv = jnp.where(has, maxv, 0.0)

        # ---- degree scalers ----
        log_deg = jnp.log(deg + 1.0)
        amp = log_deg * (1.0 / avg_log)
        att = avg_log / log_deg

        # ---- fused post-NN: (N,256) @ (256,96), scalers applied to column blocks ----
        A = jnp.concatenate([mean, minv, maxv, std], axis=-1)   # (N, 4*TF) = (N, 256)
        prod = dot(A, wall_ref[...])                            # (N, 3*HIDDEN) = (N, 96)
        post = (dot(x, wpx_ref[...]) + bpost_ref[...]
                + prod[:, 0:HIDDEN]
                + amp * prod[:, HIDDEN:2 * HIDDEN]
                + att * prod[:, 2 * HIDDEN:3 * HIDDEN])         # (N, HIDDEN)

        # ---- final per-conv linear ----
        y = dot(post, wlin_ref[...]) + blin_ref[...]            # (N, HIDDEN)

        # ---- BatchNorm (training-mode batch statistics) + ReLU ----
        mu = jnp.mean(y, axis=0, keepdims=True)
        var = jnp.mean((y - mu) * (y - mu), axis=0, keepdims=True)
        y = (y - mu) * jax.lax.rsqrt(var + EPS) * gamma_ref[...] + beta_ref[...]
        y = jnp.maximum(y, 0.0)

        # ---- global_add_pool ----
        pooled = dot(b1h_ref[...], y)                           # (G, HIDDEN)

        # ---- MLP + log_softmax ----
        h1 = jnp.maximum(dot(pooled, w1_ref[...]) + b1_ref[...], 0.0)
        h2 = jnp.maximum(dot(h1, w2_ref[...]) + b2_ref[...], 0.0)
        logits = dot(h2, w3_ref[...]) + b3_ref[...]
        m = jnp.max(logits, axis=-1, keepdims=True)
        lse = m + jnp.log(jnp.sum(jnp.exp(logits - m), axis=-1, keepdims=True))
        out_ref[...] = logits - lse

    return kernel


def pna_forward_pallas(args, avg_log):
    def full_spec(a):
        nd = a.ndim
        return pl.BlockSpec(a.shape, lambda i, nd=nd: (0,) * nd)

    in_specs = [full_spec(a) for a in args]
    out_spec = pl.BlockSpec((N_GRAPHS, 2), lambda i: (0, 0))
    return pl.pallas_call(
        make_pna_kernel(avg_log),
        out_shape=jax.ShapeDtypeStruct((N_GRAPHS, 2), jnp.float32),
        grid=(1,),
        in_specs=in_specs,
        out_specs=out_spec,
        compiler_params=pltpu.CompilerParams(dimension_semantics=("arbitrary",)),
    )(*args)


# --------------------------- pure-JAX reference -----------------------------
def ref_forward(x, src, dst, edge_attr2d, batch, p, avg_log):
    N, Fin = x.shape
    T = p["W_pre"].shape[0]
    Fout = p["W_post"].shape[1]
    E = src.shape[0]
    x_t = jnp.broadcast_to(x[:, None, :], (N, T, Fin))
    x_i = x_t[dst]
    x_j = x_t[src]
    eenc = edge_attr2d @ p["W_edge"].T + p["b_edge"]
    eenc = jnp.broadcast_to(eenc[:, None, :], (E, T, Fin))
    h = jnp.concatenate([x_i, x_j, eenc], axis=-1)
    msgs = jnp.einsum("etk,tfk->etf", h, p["W_pre"]) + p["b_pre"][None]

    seg_sum = lambda v: jax.ops.segment_sum(v, dst, num_segments=N)
    count = jax.ops.segment_sum(jnp.ones((E,), jnp.float32), dst, num_segments=N)
    denom = jnp.maximum(count, 1.0)[:, None, None]
    mean = seg_sum(msgs) / denom
    mean_sq = seg_sum(msgs * msgs) / denom
    std = jnp.sqrt(jnp.maximum(mean_sq - mean * mean, 0.0) + 1e-5)
    has = (count > 0)[:, None, None]
    minv = jnp.where(has, jax.ops.segment_min(msgs, dst, num_segments=N), 0.0)
    maxv = jnp.where(has, jax.ops.segment_max(msgs, dst, num_segments=N), 0.0)

    out = jnp.concatenate([mean, minv, maxv, std], axis=-1)
    degc = jnp.maximum(count, 1.0)[:, None, None]
    amp = jnp.log(degc + 1.0) / avg_log
    att = avg_log / jnp.log(degc + 1.0)
    out = jnp.concatenate([out, out * amp, out * att], axis=-1)
    out = jnp.concatenate([x_t, out], axis=-1)
    out = jnp.einsum("ntk,tfk->ntf", out, p["W_post"]) + p["b_post"][None]
    out = out.reshape(N, T * Fout)
    out = out @ p["W_lin"].T + p["b_lin"]

    mu = out.mean(axis=0)
    var = ((out - mu) ** 2).mean(axis=0)
    out = (out - mu) / jnp.sqrt(var + EPS) * p["gamma"] + p["beta"]
    out = jax.nn.relu(out)

    pooled = jax.ops.segment_sum(out, batch, num_segments=N_GRAPHS)
    h1 = jax.nn.relu(pooled @ p["W1"].T + p["b1"])
    h2 = jax.nn.relu(h1 @ p["W2"].T + p["b2"])
    logits = h2 @ p["W3"].T + p["b3"]
    return jax.nn.log_softmax(logits, axis=-1)


# --------------------------------- main --------------------------------------
if __name__ == "__main__":
    key = jax.random.PRNGKey(0)
    keys = jax.random.split(key, 24)

    # ---- synthetic graph data (two graphs of 8 nodes each) ----
    x = jax.random.normal(keys[0], (N_NODES, F_IN), jnp.float32)
    half_e = N_EDGES // 2
    src = jnp.concatenate([
        jax.random.randint(keys[1], (half_e,), 0, N_NODES // 2),
        jax.random.randint(keys[2], (half_e,), N_NODES // 2, N_NODES)])
    dst = jnp.concatenate([
        jax.random.randint(keys[3], (half_e,), 0, N_NODES // 2),
        jax.random.randint(keys[4], (half_e,), N_NODES // 2, N_NODES)])
    edge_attr = jax.random.normal(keys[5], (N_EDGES,), jnp.float32)   # data.edge_attr (E,)
    edge_attr2d = edge_attr[:, None]                                  # .unsqueeze(1) -> (E,1)
    batch = jnp.array([0] * (N_NODES // 2) + [1] * (N_NODES // 2), jnp.int32)

    # degree histogram (as passed to PNA.__init__) and avg log-degree
    in_deg = np.bincount(np.asarray(dst), minlength=N_NODES)
    deg_hist = np.bincount(in_deg).astype(np.float64)
    bins = np.arange(deg_hist.shape[0], dtype=np.float64)
    avg_log = float((deg_hist * np.log(bins + 1.0)).sum() / deg_hist.sum())

    # ---- deterministic parameters (torch layout: Linear.weight is (out, in)) ----
    def nrm(k, shape, scale=0.2):
        return scale * jax.random.normal(k, shape, jnp.float32)

    p = {
        "W_edge": nrm(keys[6], (F_IN, EDGE_DIM)),
        "b_edge": nrm(keys[7], (F_IN,), 0.05),
        "W_pre": nrm(keys[8], (TOWERS, F_IN, 3 * F_IN)),
        "b_pre": nrm(keys[9], (TOWERS, F_IN), 0.05),
        "W_post": nrm(keys[10], (TOWERS, F_OUT, 13 * F_IN)),
        "b_post": nrm(keys[11], (TOWERS, F_OUT), 0.05),
        "W_lin": nrm(keys[12], (HIDDEN, HIDDEN)),
        "b_lin": nrm(keys[13], (HIDDEN,), 0.05),
        "gamma": jnp.ones((HIDDEN,), jnp.float32),
        "beta": jnp.zeros((HIDDEN,), jnp.float32),
        "W1": nrm(keys[14], (H2, HIDDEN)),
        "b1": nrm(keys[15], (H2,), 0.05),
        "W2": nrm(keys[16], (H4, H2)),
        "b2": nrm(keys[17], (H4,), 0.05),
        "W3": nrm(keys[18], (2, H4)),
        "b3": nrm(keys[19], (2,), 0.05),
    }

    # ---- glue: dense one-hots / fill for the kernel ----
    node_ids = jnp.arange(N_NODES)
    S1h = (src[:, None] == node_ids[None, :]).astype(jnp.float32)     # (E, N)
    D1h_en = (dst[:, None] == node_ids[None, :]).astype(jnp.float32)  # (E, N)
    D1h_ne = D1h_en.T                                                 # (N, E)
    # arithmetic fill: 0 where edge targets the node, +1e30 otherwise (shared by min & max)
    fill3 = ((1.0 - D1h_ne) * jnp.float32(1e30))[:, :, None].astype(jnp.float32)  # (N, E, 1)
    B1h = (batch[None, :] == jnp.arange(N_GRAPHS)[:, None]).astype(jnp.float32)   # (G, N)

    # ---- glue: repack torch-layout weights into right-multiply / fused forms ----
    W_pre = p["W_pre"]
    Wi_cat = jnp.transpose(W_pre[:, :, :F_IN], (2, 0, 1)).reshape(F_IN, TF)
    Wj_cat = jnp.transpose(W_pre[:, :, F_IN:2 * F_IN], (2, 0, 1)).reshape(F_IN, TF)
    We_cat = jnp.transpose(W_pre[:, :, 2 * F_IN:3 * F_IN], (2, 0, 1)).reshape(F_IN, TF)
    bpre_cat = p["b_pre"].reshape(1, TF)

    # folded edge-encoder (exact, done in float64 numpy):
    #   eenc @ We_cat == ea * (W_edge^T @ We_cat) + (b_edge @ We_cat)
    We_cat_np = np.asarray(We_cat, np.float64)
    we_fold = jnp.asarray(
        (np.asarray(p["W_edge"], np.float64).T @ We_cat_np).astype(np.float32))    # (1, TF)
    be_fold = jnp.asarray(
        (np.asarray(p["b_edge"], np.float64)[None, :] @ We_cat_np).astype(np.float32))  # (1, TF)

    # per-tower post-NN: x-path block weights and ONE stacked (256, 96) weight matrix
    W_post_np = np.asarray(p["W_post"], np.float64)
    Wpx = jnp.transpose(p["W_post"][:, :, :F_IN], (2, 0, 1)).reshape(F_IN, HIDDEN)
    W_all_np = np.zeros((4 * TF, 3 * HIDDEN), np.float64)
    for s_idx in range(3):          # identity, amplification, attenuation
        for a_idx in range(4):      # mean, min, max, std
            k = s_idx * 4 + a_idx
            blk = W_post_np[:, :, F_IN + k * F_IN: F_IN + (k + 1) * F_IN]  # (T, Fout, Fin)
            for t in range(TOWERS):
                W_all_np[a_idx * TF + t * F_IN: a_idx * TF + (t + 1) * F_IN,
                         s_idx * HIDDEN + t * F_OUT: s_idx * HIDDEN + (t + 1) * F_OUT] = blk[t].T
    W_all = jnp.asarray(W_all_np.astype(np.float32))                  # (256, 96)
    bpost_cat = p["b_post"].reshape(1, HIDDEN)

    args = (
        x, S1h, D1h_en, D1h_ne, fill3, edge_attr2d,
        we_fold, be_fold,
        Wi_cat, Wj_cat, bpre_cat,
        Wpx, W_all, bpost_cat,
        p["W_lin"].T, p["b_lin"].reshape(1, HIDDEN),
        p["gamma"].reshape(1, HIDDEN), p["beta"].reshape(1, HIDDEN),
        B1h,
        p["W1"].T, p["b1"].reshape(1, H2),
        p["W2"].T, p["b2"].reshape(1, H4),
        p["W3"].T, p["b3"].reshape(1, 2),
    )

    out_pallas = pna_forward_pallas(args, avg_log)
    out_pallas = jax.block_until_ready(out_pallas)

    out_ref = ref_forward(x, src, dst, edge_attr2d, batch, p, avg_log)
    out_ref = jax.block_until_ready(out_ref)

    assert out_pallas.shape == (N_GRAPHS, 2)
    # Kernel runs all matmuls as single-pass bf16 MXU (precision=DEFAULT) per the perf
    # review; the reference is f32-'highest', so allow bf16-level deviation.
    assert np.allclose(np.asarray(out_pallas), np.asarray(out_ref), atol=5e-2, rtol=2e-2), (
        out_pallas, out_ref)
    print("KERNEL_OK")
</pallas_src>

<mosaic_0001>
module attributes {stable_mosaic.version = 11 : i64} {
  func.func @kernel(%arg0: i32, %arg1: memref<16x8xf32, #tpu.memory_space<vmem>>, %arg2: memref<40x16xf32, #tpu.memory_space<vmem>>, %arg3: memref<40x16xf32, #tpu.memory_space<vmem>>, %arg4: memref<16x40xf32, #tpu.memory_space<vmem>>, %arg5: memref<16x40x1xf32, #tpu.memory_space<vmem>>, %arg6: memref<40x1xf32, #tpu.memory_space<vmem>>, %arg7: memref<1x64xf32, #tpu.memory_space<vmem>>, %arg8: memref<1x64xf32, #tpu.memory_space<vmem>>, %arg9: memref<8x64xf32, #tpu.memory_space<vmem>>, %arg10: memref<8x64xf32, #tpu.memory_space<vmem>>, %arg11: memref<1x64xf32, #tpu.memory_space<vmem>>, %arg12: memref<8x32xf32, #tpu.memory_space<vmem>>, %arg13: memref<256x96xf32, #tpu.memory_space<vmem>>, %arg14: memref<1x32xf32, #tpu.memory_space<vmem>>, %arg15: memref<32x32xf32, #tpu.memory_space<vmem>>, %arg16: memref<1x32xf32, #tpu.memory_space<vmem>>, %arg17: memref<1x32xf32, #tpu.memory_space<vmem>>, %arg18: memref<1x32xf32, #tpu.memory_space<vmem>>, %arg19: memref<2x16xf32, #tpu.memory_space<vmem>>, %arg20: memref<32x16xf32, #tpu.memory_space<vmem>>, %arg21: memref<1x16xf32, #tpu.memory_space<vmem>>, %arg22: memref<16x8xf32, #tpu.memory_space<vmem>>, %arg23: memref<1x8xf32, #tpu.memory_space<vmem>>, %arg24: memref<8x2xf32, #tpu.memory_space<vmem>>, %arg25: memref<1x2xf32, #tpu.memory_space<vmem>>, %arg26: memref<2x2xf32, #tpu.memory_space<vmem>>) attributes {dimension_semantics = [#tpu.dimension_semantics<arbitrary>], iteration_bounds = array<i64: 1>, scalar_prefetch = 0 : i64, scratch_operands = 0 : i64, tpu.core_type = #tpu.core_type<tc>, window_params = [{pipeline_mode = #tpu.pipeline_mode<synchronous>, transform_indices = @transform_0, window_bounds = array<i64: 16, 8>}, {pipeline_mode = #tpu.pipeline_mode<synchronous>, transform_indices = @transform_1, window_bounds = array<i64: 40, 16>}, {pipeline_mode = #tpu.pipeline_mode<synchronous>, transform_indices = @transform_2, window_bounds = array<i64: 40, 16>}, {pipeline_mode = #tpu.pipeline_mode<synchronous>, transform_indices = @transform_3, window_bounds = array<i64: 16, 40>}, {pipeline_mode = #tpu.pipeline_mode<synchronous>, transform_indices = @transform_4, window_bounds = array<i64: 16, 40, 1>}, {pipeline_mode = #tpu.pipeline_mode<synchronous>, transform_indices = @transform_5, window_bounds = array<i64: 40, 1>}, {pipeline_mode = #tpu.pipeline_mode<synchronous>, transform_indices = @transform_6, window_bounds = array<i64: 1, 64>}, {pipeline_mode = #tpu.pipeline_mode<synchronous>, transform_indices = @transform_7, window_bounds = array<i64: 1, 64>}, {pipeline_mode = #tpu.pipeline_mode<synchronous>, transform_indices = @transform_8, window_bounds = array<i64: 8, 64>}, {pipeline_mode = #tpu.pipeline_mode<synchronous>, transform_indices = @transform_9, window_bounds = array<i64: 8, 64>}, {pipeline_mode = #tpu.pipeline_mode<synchronous>, transform_indices = @transform_10, window_bounds = array<i64: 1, 64>}, {pipeline_mode = #tpu.pipeline_mode<synchronous>, transform_indices = @transform_11, window_bounds = array<i64: 8, 32>}, {pipeline_mode = #tpu.pipeline_mode<synchronous>, transform_indices = @transform_12, window_bounds = array<i64: 256, 96>}, {pipeline_mode = #tpu.pipeline_mode<synchronous>, transform_indices = @transform_13, window_bounds = array<i64: 1, 32>}, {pipeline_mode = #tpu.pipeline_mode<synchronous>, transform_indices = @transform_14, window_bounds = array<i64: 32, 32>}, {pipeline_mode = #tpu.pipeline_mode<synchronous>, transform_indices = @transform_15, window_bounds = array<i64: 1, 32>}, {pipeline_mode = #tpu.pipeline_mode<synchronous>, transform_indices = @transform_16, window_bounds = array<i64: 1, 32>}, {pipeline_mode = #tpu.pipeline_mode<synchronous>, transform_indices = @transform_17, window_bounds = array<i64: 1, 32>}, {pipeline_mode = #tpu.pipeline_mode<synchronous>, transform_indices = @transform_18, window_bounds = array<i64: 2, 16>}, {pipeline_mode = #tpu.pipeline_mode<synchronous>, transform_indices = @transform_19, window_bounds = array<i64: 32, 16>}, {pipeline_mode = #tpu.pipeline_mode<synchronous>, transform_indices = @transform_20, window_bounds = array<i64: 1, 16>}, {pipeline_mode = #tpu.pipeline_mode<synchronous>, transform_indices = @transform_21, window_bounds = array<i64: 16, 8>}, {pipeline_mode = #tpu.pipeline_mode<synchronous>, transform_indices = @transform_22, window_bounds = array<i64: 1, 8>}, {pipeline_mode = #tpu.pipeline_mode<synchronous>, transform_indices = @transform_23, window_bounds = array<i64: 8, 2>}, {pipeline_mode = #tpu.pipeline_mode<synchronous>, transform_indices = @transform_24, window_bounds = array<i64: 1, 2>}, {pipeline_mode = #tpu.pipeline_mode<synchronous>, transform_indices = @transform_25, window_bounds = array<i64: 2, 2>}]} {
    %c0 = arith.constant 0 : index
    %c0_0 = arith.constant 0 : index
    %0 = vector.load %arg1[%c0, %c0_0] : memref<16x8xf32, #tpu.memory_space<vmem>>, vector<16x8xf32>
    %c0_1 = arith.constant 0 : index
    %c0_2 = arith.constant 0 : index
    %1 = vector.load %arg2[%c0_1, %c0_2] : memref<40x16xf32, #tpu.memory_space<vmem>>, vector<40x16xf32>
    %c0_3 = arith.constant 0 : index
    %c0_4 = arith.constant 0 : index
    %2 = vector.load %arg3[%c0_3, %c0_4] : memref<40x16xf32, #tpu.memory_space<vmem>>, vector<40x16xf32>
    %c0_5 = arith.constant 0 : index
    %c0_6 = arith.constant 0 : index
    %3 = vector.load %arg4[%c0_5, %c0_6] : memref<16x40xf32, #tpu.memory_space<vmem>>, vector<16x40xf32>
    %c0_7 = arith.constant 0 : index
    %c0_8 = arith.constant 0 : index
    %4 = vector.load %arg9[%c0_7, %c0_8] : memref<8x64xf32, #tpu.memory_space<vmem>>, vector<8x64xf32>
    %cst = arith.constant dense<0.000000e+00> : vector<16x64xf32>
    %5 = tpu.matmul %0, %4, %cst {dimension_numbers = #tpu.dot_dimension_numbers<[1], [0], [0], [1], [0, 0, 1, 1], [], []>} : vector<16x8xf32>, vector<8x64xf32>, vector<16x64xf32> -> vector<16x64xf32>
    %c0_9 = arith.constant 0 : index
    %c0_10 = arith.constant 0 : index
    %6 = vector.load %arg10[%c0_9, %c0_10] : memref<8x64xf32, #tpu.memory_space<vmem>>, vector<8x64xf32>
    %cst_11 = arith.constant dense<0.000000e+00> : vector<16x64xf32>
    %7 = tpu.matmul %0, %6, %cst_11 {dimension_numbers = #tpu.dot_dimension_numbers<[1], [0], [0], [1], [0, 0, 1, 1], [], []>} : vector<16x8xf32>, vector<8x64xf32>, vector<16x64xf32> -> vector<16x64xf32>
    %c0_12 = arith.constant 0 : index
    %c0_13 = arith.constant 0 : index
    %8 = vector.load %arg6[%c0_12, %c0_13] : memref<40x1xf32, #tpu.memory_space<vmem>>, vector<40x1xf32>
    %c0_14 = arith.constant 0 : index
    %c0_15 = arith.constant 0 : index
    %9 = vector.load %arg7[%c0_14, %c0_15] : memref<1x64xf32, #tpu.memory_space<vmem>>, vector<1x64xf32>
    %10 = vector.broadcast %8 : vector<40x1xf32> to vector<40x64xf32>
    %11 = vector.broadcast %9 : vector<1x64xf32> to vector<40x64xf32>
    %12 = arith.mulf %10, %11 : vector<40x64xf32>
    %c0_16 = arith.constant 0 : index
    %c0_17 = arith.constant 0 : index
    %13 = vector.load %arg8[%c0_16, %c0_17] : memref<1x64xf32, #tpu.memory_space<vmem>>, vector<1x64xf32>
    %14 = vector.broadcast %13 : vector<1x64xf32> to vector<40x64xf32>
    %15 = arith.addf %12, %14 : vector<40x64xf32>
    %cst_18 = arith.constant dense<0.000000e+00> : vector<40x64xf32>
    %16 = tpu.matmul %2, %5, %cst_18 {dimension_numbers = #tpu.dot_dimension_numbers<[1], [0], [0], [1], [0, 0, 1, 1], [], []>} : vector<40x16xf32>, vector<16x64xf32>, vector<40x64xf32> -> vector<40x64xf32>
    %cst_19 = arith.constant dense<0.000000e+00> : vector<40x64xf32>
    %17 = tpu.matmul %1, %7, %cst_19 {dimension_numbers = #tpu.dot_dimension_numbers<[1], [0], [0], [1], [0, 0, 1, 1], [], []>} : vector<40x16xf32>, vector<16x64xf32>, vector<40x64xf32> -> vector<40x64xf32>
    %18 = arith.addf %16, %17 : vector<40x64xf32>
    %19 = arith.addf %18, %15 : vector<40x64xf32>
    %c0_20 = arith.constant 0 : index
    %c0_21 = arith.constant 0 : index
    %20 = vector.load %arg11[%c0_20, %c0_21] : memref<1x64xf32, #tpu.memory_space<vmem>>, vector<1x64xf32>
    %21 = vector.broadcast %20 : vector<1x64xf32> to vector<40x64xf32>
    %22 = arith.addf %19, %21 : vector<40x64xf32>
    %cst_22 = arith.constant dense<0.000000e+00> : vector<16xf32>
    %23 = vector.multi_reduction <add>, %3, %cst_22 [1] : vector<16x40xf32> to vector<16xf32>
    %24 = vector.shape_cast %23 : vector<16xf32> to vector<16x1xf32>
    %cst_23 = arith.constant 1.000000e+00 : f32
    %25 = vector.broadcast %cst_23 : f32 to vector<16x1xf32>
    %26 = arith.maximumf %24, %25 : vector<16x1xf32>
    %cst_24 = arith.constant 1.000000e+00 : f32
    %27 = vector.broadcast %cst_24 : f32 to vector<16x1xf32>
    %28 = arith.divf %27, %26 : vector<16x1xf32>
    %29 = arith.mulf %22, %22 : vector<40x64xf32>
    %30 = tpu.concatenate %22, %29 in 1 : vector<40x64xf32>, vector<40x64xf32> -> vector<40x128xf32>
    %cst_25 = arith.constant dense<0.000000e+00> : vector<16x128xf32>
    %31 = tpu.matmul %3, %30, %cst_25 {dimension_numbers = #tpu.dot_dimension_numbers<[1], [0], [0], [1], [0, 0, 1, 1], [], []>} : vector<16x40xf32>, vector<40x128xf32>, vector<16x128xf32> -> vector<16x128xf32>
    %32 = vector.extract_strided_slice %31 {offsets = [0, 0], sizes = [16, 64], strides = [1, 1]} : vector<16x128xf32> to vector<16x64xf32>
    %33 = vector.broadcast %28 : vector<16x1xf32> to vector<16x64xf32>
    %34 = arith.mulf %32, %33 : vector<16x64xf32>
    %35 = vector.extract_strided_slice %31 {offsets = [0, 64], sizes = [16, 64], strides = [1, 1]} : vector<16x128xf32> to vector<16x64xf32>
    %36 = vector.broadcast %28 : vector<16x1xf32> to vector<16x64xf32>
    %37 = arith.mulf %35, %36 : vector<16x64xf32>
    %38 = arith.mulf %34, %34 : vector<16x64xf32>
    %39 = arith.subf %37, %38 : vector<16x64xf32>
    %cst_26 = arith.constant 0.000000e+00 : f32
    %40 = vector.broadcast %cst_26 : f32 to vector<16x64xf32>
    %41 = arith.maximumf %39, %40 : vector<16x64xf32>
    %cst_27 = arith.constant 9.99999974E-6 : f32
    %42 = vector.broadcast %cst_27 : f32 to vector<16x64xf32>
    %43 = arith.addf %41, %42 : vector<16x64xf32>
    %44 = math.sqrt %43 : vector<16x64xf32>
    %c0_28 = arith.constant 0 : index
    %c0_29 = arith.constant 0 : index
    %c0_30 = arith.constant 0 : index
    %45 = vector.load %arg5[%c0_28, %c0_29, %c0_30] : memref<16x40x1xf32, #tpu.memory_space<vmem>>, vector<16x40x1xf32>
    %46 = vector.shape_cast %22 : vector<40x64xf32> to vector<1x40x64xf32>
    %47 = vector.broadcast %46 : vector<1x40x64xf32> to vector<16x40x64xf32>
    %48 = vector.broadcast %45 : vector<16x40x1xf32> to vector<16x40x64xf32>
    %49 = arith.addf %47, %48 : vector<16x40x64xf32>
    %cst_31 = arith.constant dense<0x7F800000> : vector<16x64xf32>
    %50 = vector.multi_reduction <minimumf>, %49, %cst_31 [1] : vector<16x40x64xf32> to vector<16x64xf32>
    %51 = vector.shape_cast %22 : vector<40x64xf32> to vector<1x40x64xf32>
    %52 = vector.broadcast %51 : vector<1x40x64xf32> to vector<16x40x64xf32>
    %53 = vector.broadcast %45 : vector<16x40x1xf32> to vector<16x40x64xf32>
    %54 = arith.subf %52, %53 : vector<16x40x64xf32>
    %cst_32 = arith.constant dense<0xFF800000> : vector<16x64xf32>
    %55 = vector.multi_reduction <maximumf>, %54, %cst_32 [1] : vector<16x40x64xf32> to vector<16x64xf32>
    %cst_33 = arith.constant 0.000000e+00 : f32
    %56 = vector.broadcast %cst_33 : f32 to vector<16x1xf32>
    %57 = arith.cmpf ogt, %24, %56 : vector<16x1xf32>
    %cst_34 = arith.constant 0.000000e+00 : f32
    %58 = vector.shape_cast %57 : vector<16x1xi1> to vector<16x1xi1>
    %59 = vector.broadcast %58 : vector<16x1xi1> to vector<16x64xi1>
    %60 = vector.broadcast %cst_34 : f32 to vector<16x64xf32>
    %61 = arith.select %59, %50, %60 : vector<16x64xi1>, vector<16x64xf32>
    %cst_35 = arith.constant 0.000000e+00 : f32
    %62 = vector.shape_cast %57 : vector<16x1xi1> to vector<16x1xi1>
    %63 = vector.broadcast %62 : vector<16x1xi1> to vector<16x64xi1>
    %64 = vector.broadcast %cst_35 : f32 to vector<16x64xf32>
    %65 = arith.select %63, %55, %64 : vector<16x64xi1>, vector<16x64xf32>
    %cst_36 = arith.constant 1.000000e+00 : f32
    %66 = vector.broadcast %cst_36 : f32 to vector<16x1xf32>
    %67 = arith.addf %26, %66 : vector<16x1xf32>
    %68 = math.log %67 : vector<16x1xf32>
    %cst_37 = arith.constant 0.847188353 : f32
    %69 = vector.broadcast %cst_37 : f32 to vector<16x1xf32>
    %70 = arith.mulf %68, %69 : vector<16x1xf32>
    %cst_38 = arith.constant 1.1803751 : f32
    %71 = vector.broadcast %cst_38 : f32 to vector<16x1xf32>
    %72 = arith.divf %71, %68 : vector<16x1xf32>
    %73 = tpu.concatenate %34, %61, %65, %44 in 1 : vector<16x64xf32>, vector<16x64xf32>, vector<16x64xf32>, vector<16x64xf32> -> vector<16x256xf32>
    %c0_39 = arith.constant 0 : index
    %c0_40 = arith.constant 0 : index
    %74 = vector.load %arg13[%c0_39, %c0_40] : memref<256x96xf32, #tpu.memory_space<vmem>>, vector<256x96xf32>
    %cst_41 = arith.constant dense<0.000000e+00> : vector<16x96xf32>
    %75 = tpu.matmul %73, %74, %cst_41 {dimension_numbers = #tpu.dot_dimension_numbers<[1], [0], [0], [1], [0, 0, 1, 1], [], []>} : vector<16x256xf32>, vector<256x96xf32>, vector<16x96xf32> -> vector<16x96xf32>
    %c0_42 = arith.constant 0 : index
    %c0_43 = arith.constant 0 : index
    %76 = vector.load %arg12[%c0_42, %c0_43] : memref<8x32xf32, #tpu.memory_space<vmem>>, vector<8x32xf32>
    %cst_44 = arith.constant dense<0.000000e+00> : vector<16x32xf32>
    %77 = tpu.matmul %0, %76, %cst_44 {dimension_numbers = #tpu.dot_dimension_numbers<[1], [0], [0], [1], [0, 0, 1, 1], [], []>} : vector<16x8xf32>, vector<8x32xf32>, vector<16x32xf32> -> vector<16x32xf32>
    %c0_45 = arith.constant 0 : index
    %c0_46 = arith.constant 0 : index
    %78 = vector.load %arg14[%c0_45, %c0_46] : memref<1x32xf32, #tpu.memory_space<vmem>>, vector<1x32xf32>
    %79 = vector.broadcast %78 : vector<1x32xf32> to vector<16x32xf32>
    %80 = arith.addf %77, %79 : vector<16x32xf32>
    %81 = vector.extract_strided_slice %75 {offsets = [0, 0], sizes = [16, 32], strides = [1, 1]} : vector<16x96xf32> to vector<16x32xf32>
    %82 = arith.addf %80, %81 : vector<16x32xf32>
    %83 = vector.extract_strided_slice %75 {offsets = [0, 32], sizes = [16, 32], strides = [1, 1]} : vector<16x96xf32> to vector<16x32xf32>
    %84 = vector.broadcast %70 : vector<16x1xf32> to vector<16x32xf32>
    %85 = arith.mulf %84, %83 : vector<16x32xf32>
    %86 = arith.addf %82, %85 : vector<16x32xf32>
    %87 = vector.extract_strided_slice %75 {offsets = [0, 64], sizes = [16, 32], strides = [1, 1]} : vector<16x96xf32> to vector<16x32xf32>
    %88 = vector.broadcast %72 : vector<16x1xf32> to vector<16x32xf32>
    %89 = arith.mulf %88, %87 : vector<16x32xf32>
    %90 = arith.addf %86, %89 : vector<16x32xf32>
    %c0_47 = arith.constant 0 : index
    %c0_48 = arith.constant 0 : index
    %91 = vector.load %arg15[%c0_47, %c0_48] : memref<32x32xf32, #tpu.memory_space<vmem>>, vector<32x32xf32>
    %cst_49 = arith.constant dense<0.000000e+00> : vector<16x32xf32>
    %92 = tpu.matmul %90, %91, %cst_49 {dimension_numbers = #tpu.dot_dimension_numbers<[1], [0], [0], [1], [0, 0, 1, 1], [], []>} : vector<16x32xf32>, vector<32x32xf32>, vector<16x32xf32> -> vector<16x32xf32>
    %c0_50 = arith.constant 0 : index
    %c0_51 = arith.constant 0 : index
    %93 = vector.load %arg16[%c0_50, %c0_51] : memref<1x32xf32, #tpu.memory_space<vmem>>, vector<1x32xf32>
    %94 = vector.broadcast %93 : vector<1x32xf32> to vector<16x32xf32>
    %95 = arith.addf %92, %94 : vector<16x32xf32>
    %cst_52 = arith.constant dense<0.000000e+00> : vector<32xf32>
    %96 = vector.multi_reduction <add>, %95, %cst_52 [0] : vector<16x32xf32> to vector<32xf32>
    %97 = vector.shape_cast %96 : vector<32xf32> to vector<1x32xf32>
    %cst_53 = arith.constant 1.600000e+01 : f32
    %98 = vector.broadcast %cst_53 : f32 to vector<1x32xf32>
    %99 = arith.divf %97, %98 : vector<1x32xf32>
    %100 = vector.broadcast %99 : vector<1x32xf32> to vector<16x32xf32>
    %101 = arith.subf %95, %100 : vector<16x32xf32>
    %102 = vector.broadcast %99 : vector<1x32xf32> to vector<16x32xf32>
    %103 = arith.subf %95, %102 : vector<16x32xf32>
    %104 = arith.mulf %101, %103 : vector<16x32xf32>
    %cst_54 = arith.constant dense<0.000000e+00> : vector<32xf32>
    %105 = vector.multi_reduction <add>, %104, %cst_54 [0] : vector<16x32xf32> to vector<32xf32>
    %106 = vector.shape_cast %105 : vector<32xf32> to vector<1x32xf32>
    %cst_55 = arith.constant 1.600000e+01 : f32
    %107 = vector.broadcast %cst_55 : f32 to vector<1x32xf32>
    %108 = arith.divf %106, %107 : vector<1x32xf32>
    %109 = vector.broadcast %99 : vector<1x32xf32> to vector<16x32xf32>
    %110 = arith.subf %95, %109 : vector<16x32xf32>
    %cst_56 = arith.constant 9.99999974E-6 : f32
    %111 = vector.broadcast %cst_56 : f32 to vector<1x32xf32>
    %112 = arith.addf %108, %111 : vector<1x32xf32>
    %113 = math.rsqrt %112 : vector<1x32xf32>
    %114 = vector.broadcast %113 : vector<1x32xf32> to vector<16x32xf32>
    %115 = arith.mulf %110, %114 : vector<16x32xf32>
    %c0_57 = arith.constant 0 : index
    %c0_58 = arith.constant 0 : index
    %116 = vector.load %arg17[%c0_57, %c0_58] : memref<1x32xf32, #tpu.memory_space<vmem>>, vector<1x32xf32>
    %117 = vector.broadcast %116 : vector<1x32xf32> to vector<16x32xf32>
    %118 = arith.mulf %115, %117 : vector<16x32xf32>
    %c0_59 = arith.constant 0 : index
    %c0_60 = arith.constant 0 : index
    %119 = vector.load %arg18[%c0_59, %c0_60] : memref<1x32xf32, #tpu.memory_space<vmem>>, vector<1x32xf32>
    %120 = vector.broadcast %119 : vector<1x32xf32> to vector<16x32xf32>
    %121 = arith.addf %118, %120 : vector<16x32xf32>
    %cst_61 = arith.constant 0.000000e+00 : f32
    %122 = vector.broadcast %cst_61 : f32 to vector<16x32xf32>
    %123 = arith.maximumf %121, %122 : vector<16x32xf32>
    %c0_62 = arith.constant 0 : index
    %c0_63 = arith.constant 0 : index
    %124 = vector.load %arg19[%c0_62, %c0_63] : memref<2x16xf32, #tpu.memory_space<vmem>>, vector<2x16xf32>
    %cst_64 = arith.constant dense<0.000000e+00> : vector<2x32xf32>
    %125 = tpu.matmul %124, %123, %cst_64 {dimension_numbers = #tpu.dot_dimension_numbers<[1], [0], [0], [1], [0, 0, 1, 1], [], []>} : vector<2x16xf32>, vector<16x32xf32>, vector<2x32xf32> -> vector<2x32xf32>
    %c0_65 = arith.constant 0 : index
    %c0_66 = arith.constant 0 : index
    %126 = vector.load %arg20[%c0_65, %c0_66] : memref<32x16xf32, #tpu.memory_space<vmem>>, vector<32x16xf32>
    %cst_67 = arith.constant dense<0.000000e+00> : vector<2x16xf32>
    %127 = tpu.matmul %125, %126, %cst_67 {dimension_numbers = #tpu.dot_dimension_numbers<[1], [0], [0], [1], [0, 0, 1, 1], [], []>} : vector<2x32xf32>, vector<32x16xf32>, vector<2x16xf32> -> vector<2x16xf32>
    %c0_68 = arith.constant 0 : index
    %c0_69 = arith.constant 0 : index
    %128 = vector.load %arg21[%c0_68, %c0_69] : memref<1x16xf32, #tpu.memory_space<vmem>>, vector<1x16xf32>
    %129 = vector.broadcast %128 : vector<1x16xf32> to vector<2x16xf32>
    %130 = arith.addf %127, %129 : vector<2x16xf32>
    %cst_70 = arith.constant 0.000000e+00 : f32
    %131 = vector.broadcast %cst_70 : f32 to vector<2x16xf32>
    %132 = arith.maximumf %130, %131 : vector<2x16xf32>
    %c0_71 = arith.constant 0 : index
    %c0_72 = arith.constant 0 : index
    %133 = vector.load %arg22[%c0_71, %c0_72] : memref<16x8xf32, #tpu.memory_space<vmem>>, vector<16x8xf32>
    %cst_73 = arith.constant dense<0.000000e+00> : vector<2x8xf32>
    %134 = tpu.matmul %132, %133, %cst_73 {dimension_numbers = #tpu.dot_dimension_numbers<[1], [0], [0], [1], [0, 0, 1, 1], [], []>} : vector<2x16xf32>, vector<16x8xf32>, vector<2x8xf32> -> vector<2x8xf32>
    %c0_74 = arith.constant 0 : index
    %c0_75 = arith.constant 0 : index
    %135 = vector.load %arg23[%c0_74, %c0_75] : memref<1x8xf32, #tpu.memory_space<vmem>>, vector<1x8xf32>
    %136 = vector.broadcast %135 : vector<1x8xf32> to vector<2x8xf32>
    %137 = arith.addf %134, %136 : vector<2x8xf32>
    %cst_76 = arith.constant 0.000000e+00 : f32
    %138 = vector.broadcast %cst_76 : f32 to vector<2x8xf32>
    %139 = arith.maximumf %137, %138 : vector<2x8xf32>
    %c0_77 = arith.constant 0 : index
    %c0_78 = arith.constant 0 : index
    %140 = vector.load %arg24[%c0_77, %c0_78] : memref<8x2xf32, #tpu.memory_space<vmem>>, vector<8x2xf32>
    %cst_79 = arith.constant dense<0.000000e+00> : vector<2x2xf32>
    %141 = tpu.matmul %139, %140, %cst_79 {dimension_numbers = #tpu.dot_dimension_numbers<[1], [0], [0], [1], [0, 0, 1, 1], [], []>} : vector<2x8xf32>, vector<8x2xf32>, vector<2x2xf32> -> vector<2x2xf32>
    %c0_80 = arith.constant 0 : index
    %c0_81 = arith.constant 0 : index
    %142 = vector.load %arg25[%c0_80, %c0_81] : memref<1x2xf32, #tpu.memory_space<vmem>>, vector<1x2xf32>
    %143 = vector.broadcast %142 : vector<1x2xf32> to vector<2x2xf32>
    %144 = arith.addf %141, %143 : vector<2x2xf32>
    %cst_82 = arith.constant dense<0xFF800000> : vector<2xf32>
    %145 = vector.multi_reduction <maximumf>, %144, %cst_82 [1] : vector<2x2xf32> to vector<2xf32>
    %146 = vector.shape_cast %145 : vector<2xf32> to vector<2x1xf32>
    %147 = vector.broadcast %146 : vector<2x1xf32> to vector<2x2xf32>
    %148 = arith.subf %144, %147 : vector<2x2xf32>
    %149 = math.exp %148 : vector<2x2xf32>
    %cst_83 = arith.constant dense<0.000000e+00> : vector<2xf32>
    %150 = vector.multi_reduction <add>, %149, %cst_83 [1] : vector<2x2xf32> to vector<2xf32>
    %151 = vector.shape_cast %150 : vector<2xf32> to vector<2x1xf32>
    %152 = math.log %151 : vector<2x1xf32>
    %153 = arith.addf %146, %152 : vector<2x1xf32>
    %154 = vector.broadcast %153 : vector<2x1xf32> to vector<2x2xf32>
    %155 = arith.subf %144, %154 : vector<2x2xf32>
    %c0_84 = arith.constant 0 : index
    %c0_85 = arith.constant 0 : index
    %156 = vector.load %arg26[%c0_84, %c0_85] : memref<2x2xf32, #tpu.memory_space<vmem>>, vector<2x2xf32>
    tpu.vector_store %arg26[%c0_84, %c0_85], %155 {strides = array<i32>} : memref<2x2xf32, #tpu.memory_space<vmem>>, vector<2x2xf32>,
    return
  }
  func.func @transform_0(%arg0: i32) -> (i32, i32) {
    %c0_i32 = arith.constant 0 : i32
    %c0_i32_0 = arith.constant 0 : i32
    %c0_i32_1 = arith.constant 0 : i32
    return %c0_i32, %c0_i32_0 : i32, i32
  }
  func.func @transform_1(%arg0: i32) -> (i32, i32) {
    %c0_i32 = arith.constant 0 : i32
    %c0_i32_0 = arith.constant 0 : i32
    %c0_i32_1 = arith.constant 0 : i32
    return %c0_i32, %c0_i32_0 : i32, i32
  }
  func.func @transform_2(%arg0: i32) -> (i32, i32) {
    %c0_i32 = arith.constant 0 : i32
    %c0_i32_0 = arith.constant 0 : i32
    %c0_i32_1 = arith.constant 0 : i32
    return %c0_i32, %c0_i32_0 : i32, i32
  }
  func.func @transform_3(%arg0: i32) -> (i32, i32) {
    %c0_i32 = arith.constant 0 : i32
    %c0_i32_0 = arith.constant 0 : i32
    %c0_i32_1 = arith.constant 0 : i32
    return %c0_i32, %c0_i32_0 : i32, i32
  }
  func.func @transform_4(%arg0: i32) -> (i32, i32, i32) {
    %c0_i32 = arith.constant 0 : i32
    %c0_i32_0 = arith.constant 0 : i32
    %c0_i32_1 = arith.constant 0 : i32
    %c0_i32_2 = arith.constant 0 : i32
    return %c0_i32, %c0_i32_0, %c0_i32_1 : i32, i32, i32
  }
  func.func @transform_5(%arg0: i32) -> (i32, i32) {
    %c0_i32 = arith.constant 0 : i32
    %c0_i32_0 = arith.constant 0 : i32
    %c0_i32_1 = arith.constant 0 : i32
    return %c0_i32, %c0_i32_0 : i32, i32
  }
  func.func @transform_6(%arg0: i32) -> (i32, i32) {
    %c0_i32 = arith.constant 0 : i32
    %c0_i32_0 = arith.constant 0 : i32
    %c0_i32_1 = arith.constant 0 : i32
    return %c0_i32, %c0_i32_0 : i32, i32
  }
  func.func @transform_7(%arg0: i32) -> (i32, i32) {
    %c0_i32 = arith.constant 0 : i32
    %c0_i32_0 = arith.constant 0 : i32
    %c0_i32_1 = arith.constant 0 : i32
    return %c0_i32, %c0_i32_0 : i32, i32
  }
  func.func @transform_8(%arg0: i32) -> (i32, i32) {
    %c0_i32 = arith.constant 0 : i32
    %c0_i32_0 = arith.constant 0 : i32
    %c0_i32_1 = arith.constant 0 : i32
    return %c0_i32, %c0_i32_0 : i32, i32
  }
  func.func @transform_9(%arg0: i32) -> (i32, i32) {
    %c0_i32 = arith.constant 0 : i32
    %c0_i32_0 = arith.constant 0 : i32
    %c0_i32_1 = arith.constant 0 : i32
    return %c0_i32, %c0_i32_0 : i32, i32
  }
  func.func @transform_10(%arg0: i32) -> (i32, i32) {
    %c0_i32 = arith.constant 0 : i32
    %c0_i32_0 = arith.constant 0 : i32
    %c0_i32_1 = arith.constant 0 : i32
    return %c0_i32, %c0_i32_0 : i32, i32
  }
  func.func @transform_11(%arg0: i32) -> (i32, i32) {
    %c0_i32 = arith.constant 0 : i32
    %c0_i32_0 = arith.constant 0 : i32
    %c0_i32_1 = arith.constant 0 : i32
    return %c0_i32, %c0_i32_0 : i32, i32
  }
  func.func @transform_12(%arg0: i32) -> (i32, i32) {
    %c0_i32 = arith.constant 0 : i32
    %c0_i32_0 = arith.constant 0 : i32
    %c0_i32_1 = arith.constant 0 : i32
    return %c0_i32, %c0_i32_0 : i32, i32
  }
  func.func @transform_13(%arg0: i32) -> (i32, i32) {
    %c0_i32 = arith.constant 0 : i32
    %c0_i32_0 = arith.constant 0 : i32
    %c0_i32_1 = arith.constant 0 : i32
    return %c0_i32, %c0_i32_0 : i32, i32
  }
  func.func @transform_14(%arg0: i32) -> (i32, i32) {
    %c0_i32 = arith.constant 0 : i32
    %c0_i32_0 = arith.constant 0 : i32
    %c0_i32_1 = arith.constant 0 : i32
    return %c0_i32, %c0_i32_0 : i32, i32
  }
  func.func @transform_15(%arg0: i32) -> (i32, i32) {
    %c0_i32 = arith.constant 0 : i32
    %c0_i32_0 = arith.constant 0 : i32
    %c0_i32_1 = arith.constant 0 : i32
    return %c0_i32, %c0_i32_0 : i32, i32
  }
  func.func @transform_16(%arg0: i32) -> (i32, i32) {
    %c0_i32 = arith.constant 0 : i32
    %c0_i32_0 = arith.constant 0 : i32
    %c0_i32_1 = arith.constant 0 : i32
    return %c0_i32, %c0_i32_0 : i32, i32
  }
  func.func @transform_17(%arg0: i32) -> (i32, i32) {
    %c0_i32 = arith.constant 0 : i32
    %c0_i32_0 = arith.constant 0 : i32
    %c0_i32_1 = arith.constant 0 : i32
    return %c0_i32, %c0_i32_0 : i32, i32
  }
  func.func @transform_18(%arg0: i32) -> (i32, i32) {
    %c0_i32 = arith.constant 0 : i32
    %c0_i32_0 = arith.constant 0 : i32
    %c0_i32_1 = arith.constant 0 : i32
    return %c0_i32, %c0_i32_0 : i32, i32
  }
  func.func @transform_19(%arg0: i32) -> (i32, i32) {
    %c0_i32 = arith.constant 0 : i32
    %c0_i32_0 = arith.constant 0 : i32
    %c0_i32_1 = arith.constant 0 : i32
    return %c0_i32, %c0_i32_0 : i32, i32
  }
  func.func @transform_20(%arg0: i32) -> (i32, i32) {
    %c0_i32 = arith.constant 0 : i32
    %c0_i32_0 = arith.constant 0 : i32
    %c0_i32_1 = arith.constant 0 : i32
    return %c0_i32, %c0_i32_0 : i32, i32
  }
  func.func @transform_21(%arg0: i32) -> (i32, i32) {
    %c0_i32 = arith.constant 0 : i32
    %c0_i32_0 = arith.constant 0 : i32
    %c0_i32_1 = arith.constant 0 : i32
    return %c0_i32, %c0_i32_0 : i32, i32
  }
  func.func @transform_22(%arg0: i32) -> (i32, i32) {
    %c0_i32 = arith.constant 0 : i32
    %c0_i32_0 = arith.constant 0 : i32
    %c0_i32_1 = arith.constant 0 : i32
    return %c0_i32, %c0_i32_0 : i32, i32
  }
  func.func @transform_23(%arg0: i32) -> (i32, i32) {
    %c0_i32 = arith.constant 0 : i32
    %c0_i32_0 = arith.constant 0 : i32
    %c0_i32_1 = arith.constant 0 : i32
    return %c0_i32, %c0_i32_0 : i32, i32
  }
  func.func @transform_24(%arg0: i32) -> (i32, i32) {
    %c0_i32 = arith.constant 0 : i32
    %c0_i32_0 = arith.constant 0 : i32
    %c0_i32_1 = arith.constant 0 : i32
    return %c0_i32, %c0_i32_0 : i32, i32
  }
  func.func @transform_25(%arg0: i32) -> (i32, i32) {
    %c0_i32 = arith.constant 0 : i32
    %c0_i32_0 = arith.constant 0 : i32
    %c0_i32_1 = arith.constant 0 : i32
    return %c0_i32, %c0_i32_0 : i32, i32
  }
}

</mosaic_0001>

<llo_original>
// kernel: tpu_custom_call.1
$region0: #{tpu_custom_call.1}
  #allocation0 [shape = 'u32[]', space=smem, size = 0x4, offset = 0x4, fixed_abs, tag = 'smem constant byte address 0x4 - core index']
  #allocation1 [shape = 'u32[144,128]{1,0:T(1,128)}', space=vmem, size = 0x12000, scoped, tag = 'internal scratch']
  %s0 = inlined_call_operand.vmem [shape: f32[16,8], index: 0, kind: input, shape index: {}]
  %s1 = inlined_call_operand.vmem [shape: f32[40,16], index: 1, kind: input, shape index: {}]
  %s2 = inlined_call_operand.vmem [shape: f32[40,16], index: 2, kind: input, shape index: {}]
  %s3 = inlined_call_operand.vmem [shape: f32[16,40], index: 3, kind: input, shape index: {}]
  %s4 = inlined_call_operand.vmem [shape: f32[16,40,1], index: 4, kind: input, shape index: {}]
  %s5 = inlined_call_operand.vmem [shape: f32[40,1], index: 5, kind: input, shape index: {}]
  %s6 = inlined_call_operand.vmem [shape: f32[1,64], index: 6, kind: input, shape index: {}]
  %s7 = inlined_call_operand.vmem [shape: f32[1,64], index: 7, kind: input, shape index: {}]
  %s8 = inlined_call_operand.vmem [shape: f32[8,64], index: 8, kind: input, shape index: {}]
  %s9 = inlined_call_operand.vmem [shape: f32[8,64], index: 9, kind: input, shape index: {}]
  %s10 = inlined_call_operand.vmem [shape: f32[1,64], index: 10, kind: input, shape index: {}]
  %s11 = inlined_call_operand.vmem [shape: f32[8,32], index: 11, kind: input, shape index: {}]
  %s12 = inlined_call_operand.vmem [shape: f32[256,96], index: 12, kind: input, shape index: {}]
  %s13 = inlined_call_operand.vmem [shape: f32[1,32], index: 13, kind: input, shape index: {}]
  %s14 = inlined_call_operand.vmem [shape: f32[32,32], index: 14, kind: input, shape index: {}]
  %s15 = inlined_call_operand.vmem [shape: f32[1,32], index: 15, kind: input, shape index: {}]
  %s16 = inlined_call_operand.vmem [shape: f32[1,32], index: 16, kind: input, shape index: {}]
  %s17 = inlined_call_operand.vmem [shape: f32[1,32], index: 17, kind: input, shape index: {}]
  %s18 = inlined_call_operand.vmem [shape: f32[2,16], index: 18, kind: input, shape index: {}]
  %s19 = inlined_call_operand.vmem [shape: f32[32,16], index: 19, kind: input, shape index: {}]
  %s20 = inlined_call_operand.vmem [shape: f32[1,16], index: 20, kind: input, shape index: {}]
  %s21 = inlined_call_operand.vmem [shape: f32[16,8], index: 21, kind: input, shape index: {}]
  %s22 = inlined_call_operand.vmem [shape: f32[1,8], index: 22, kind: input, shape index: {}]
  %s23 = inlined_call_operand.vmem [shape: f32[8,2], index: 23, kind: input, shape index: {}]
  %s24 = inlined_call_operand.vmem [shape: f32[1,2], index: 24, kind: input, shape index: {}]
  %s25 = inlined_call_operand.hbm [shape: f32[2,2], index: 25, kind: output, shape index: {}]
  %s26 = sld [smem:[#allocation0]]
  $region110: #{tpu_custom_call.1} parent=0
    _
  %s28 = ssub.s32 1, %s26
  %s29 = scalar_select 0, %s28, %s26
  $region1: #{tpu_custom_call.1} parent=0
    #allocation2 [shape = 'u8[1024]{0}', space=vmem, size = 0x400, scoped, tag = 'output window, operand 0, single buffered']
    #allocation3 [shape = 's32[1]{0}', space=sflag, size = 0x4, scoped, tag = 'scoped memory for tpu_custom_call.1']
    %30 = vsyncpa [#allocation3], 0
    // Predicated region
    $region2: #{tpu_custom_call.1} parent=1 // pred_check
      _
    $region3: #{tpu_custom_call.1} parent=1 // pred_check_branch
      %32 = sbr.rel (0) target = $region5
    $region4: #{tpu_custom_call.1} parent=1 // pred_region
      _
    $region5: #{tpu_custom_call.1} parent=1 // pred_fallthru
      _
    // Predicated region
    $region6: #{tpu_custom_call.1} parent=1 // pred_check
      _
    $region7: #{tpu_custom_call.1} parent=1 // pred_check_branch
      %34 = sbr.rel (0) target = $region9
    $region8: #{tpu_custom_call.1} parent=1 // pred_region
      _
    $region9: #{tpu_custom_call.1} parent=1 // pred_fallthru
      _
    // Predicated region
    $region10: #{tpu_custom_call.1} parent=1 // pred_check
      _
    $region11: #{tpu_custom_call.1} parent=1 // pred_check_branch
      %36 = sbr.rel (0) target = $region13
    $region12: #{tpu_custom_call.1} parent=1 // pred_region
      _
    $region13: #{tpu_custom_call.1} parent=1 // pred_fallthru
      _
    // Predicated region
    $region14: #{tpu_custom_call.1} parent=1 // pred_check
      _
    $region15: #{tpu_custom_call.1} parent=1 // pred_check_branch
      %38 = sbr.rel (0) target = $region17
    $region16: #{tpu_custom_call.1} parent=1 // pred_region
      _
    $region17: #{tpu_custom_call.1} parent=1 // pred_fallthru
      _
    // Predicated region
    $region18: #{tpu_custom_call.1} parent=1 // pred_check
      _
    $region19: #{tpu_custom_call.1} parent=1 // pred_check_branch
      %40 = sbr.rel (0) target = $region21
    $region20: #{tpu_custom_call.1} parent=1 // pred_region
      _
    $region21: #{tpu_custom_call.1} parent=1 // pred_fallthru
      _
    // Predicated region
    $region22: #{tpu_custom_call.1} parent=1 // pred_check
      _
    $region23: #{tpu_custom_call.1} parent=1 // pred_check_branch
      %42 = sbr.rel (0) target = $region25
    $region24: #{tpu_custom_call.1} parent=1 // pred_region
      _
    $region25: #{tpu_custom_call.1} parent=1 // pred_fallthru
      _
    // Predicated region
    $region26: #{tpu_custom_call.1} parent=1 // pred_check
      _
    $region27: #{tpu_custom_call.1} parent=1 // pred_check_branch
      %44 = sbr.rel (0) target = $region29
    $region28: #{tpu_custom_call.1} parent=1 // pred_region
      _
    $region29: #{tpu_custom_call.1} parent=1 // pred_fallthru
      _
    // Predicated region
    $region30: #{tpu_custom_call.1} parent=1 // pred_check
      _
    $region31: #{tpu_custom_call.1} parent=1 // pred_check_branch
      %46 = sbr.rel (0) target = $region33
    $region32: #{tpu_custom_call.1} parent=1 // pred_region
      _
    $region33: #{tpu_custom_call.1} parent=1 // pred_fallthru
      _
    // Predicated region
    $region34: #{tpu_custom_call.1} parent=1 // pred_check
      _
    $region35: #{tpu_custom_call.1} parent=1 // pred_check_branch
      %48 = sbr.rel (0) target = $region37
    $region36: #{tpu_custom_call.1} parent=1 // pred_region
      _
    $region37: #{tpu_custom_call.1} parent=1 // pred_fallthru
      _
    // Predicated region
    $region38: #{tpu_custom_call.1} parent=1 // pred_check
      _
    $region39: #{tpu_custom_call.1} parent=1 // pred_check_branch
      %50 = sbr.rel (0) target = $region41
    $region40: #{tpu_custom_call.1} parent=1 // pred_region
      _
    $region41: #{tpu_custom_call.1} parent=1 // pred_fallthru
      _
    // Predicated region
    $region42: #{tpu_custom_call.1} parent=1 // pred_check
      _
    $region43: #{tpu_custom_call.1} parent=1 // pred_check_branch
      %52 = sbr.rel (0) target = $region45
    $region44: #{tpu_custom_call.1} parent=1 // pred_region
      _
    $region45: #{tpu_custom_call.1} parent=1 // pred_fallthru
      _
    // Predicated region
    $region46: #{tpu_custom_call.1} parent=1 // pred_check
      _
    $region47: #{tpu_custom_call.1} parent=1 // pred_check_branch
      %54 = sbr.rel (0) target = $region49
    $region48: #{tpu_custom_call.1} parent=1 // pred_region
      _
    $region49: #{tpu_custom_call.1} parent=1 // pred_fallthru
      _
    // Predicated region
    $region50: #{tpu_custom_call.1} parent=1 // pred_check
      _
    $region51: #{tpu_custom_call.1} parent=1 // pred_check_branch
      %56 = sbr.rel (0) target = $region53
    $region52: #{tpu_custom_call.1} parent=1 // pred_region
      _
    $region53: #{tpu_custom_call.1} parent=1 // pred_fallthru
      _
    // Predicated region
    $region54: #{tpu_custom_call.1} parent=1 // pred_check
      _
    $region55: #{tpu_custom_call.1} parent=1 // pred_check_branch
      %58 = sbr.rel (0) target = $region57
    $region56: #{tpu_custom_call.1} parent=1 // pred_region
      _
    $region57: #{tpu_custom_call.1} parent=1 // pred_fallthru
      _
    // Predicated region
    $region58: #{tpu_custom_call.1} parent=1 // pred_check
      _
    $region59: #{tpu_custom_call.1} parent=1 // pred_check_branch
      %60 = sbr.rel (0) target = $region61
    $region60: #{tpu_custom_call.1} parent=1 // pred_region
      _
    $region61: #{tpu_custom_call.1} parent=1 // pred_fallthru
      _
    // Predicated region
    $region62: #{tpu_custom_call.1} parent=1 // pred_check
      _
    $region63: #{tpu_custom_call.1} parent=1 // pred_check_branch
      %62 = sbr.rel (0) target = $region65
    $region64: #{tpu_custom_call.1} parent=1 // pred_region
      _
    $region65: #{tpu_custom_call.1} parent=1 // pred_fallthru
      _
    // Predicated region
    $region66: #{tpu_custom_call.1} parent=1 // pred_check
      _
    $region67: #{tpu_custom_call.1} parent=1 // pred_check_branch
      %64 = sbr.rel (0) target = $region69
    $region68: #{tpu_custom_call.1} parent=1 // pred_region
      _
    $region69: #{tpu_custom_call.1} parent=1 // pred_fallthru
      _
    // Predicated region
    $region70: #{tpu_custom_call.1} parent=1 // pred_check
      _
    $region71: #{tpu_custom_call.1} parent=1 // pred_check_branch
      %66 = sbr.rel (0) target = $region73
    $region72: #{tpu_custom_call.1} parent=1 // pred_region
      _
    $region73: #{tpu_custom_call.1} parent=1 // pred_fallthru
      _
    // Predicated region
    $region74: #{tpu_custom_call.1} parent=1 // pred_check
      _
    $region75: #{tpu_custom_call.1} parent=1 // pred_check_branch
      %68 = sbr.rel (0) target = $region77
    $region76: #{tpu_custom_call.1} parent=1 // pred_region
      _
    $region77: #{tpu_custom_call.1} parent=1 // pred_fallthru
      _
    // Predicated region
    $region78: #{tpu_custom_call.1} parent=1 // pred_check
      _
    $region79: #{tpu_custom_call.1} parent=1 // pred_check_branch
      %70 = sbr.rel (0) target = $region81
    $region80: #{tpu_custom_call.1} parent=1 // pred_region
      _
    $region81: #{tpu_custom_call.1} parent=1 // pred_fallthru
      _
    // Predicated region
    $region82: #{tpu_custom_call.1} parent=1 // pred_check
      _
    $region83: #{tpu_custom_call.1} parent=1 // pred_check_branch
      %72 = sbr.rel (0) target = $region85
    $region84: #{tpu_custom_call.1} parent=1 // pred_region
      _
    $region85: #{tpu_custom_call.1} parent=1 // pred_fallthru
      _
    // Predicated region
    $region86: #{tpu_custom_call.1} parent=1 // pred_check
      _
    $region87: #{tpu_custom_call.1} parent=1 // pred_check_branch
      %74 = sbr.rel (0) target = $region89
    $region88: #{tpu_custom_call.1} parent=1 // pred_region
      _
    $region89: #{tpu_custom_call.1} parent=1 // pred_fallthru
      _
    // Predicated region
    $region90: #{tpu_custom_call.1} parent=1 // pred_check
      _
    $region91: #{tpu_custom_call.1} parent=1 // pred_check_branch
      %76 = sbr.rel (0) target = $region93
    $region92: #{tpu_custom_call.1} parent=1 // pred_region
      _
    $region93: #{tpu_custom_call.1} parent=1 // pred_fallthru
      _
    // Predicated region
    $region94: #{tpu_custom_call.1} parent=1 // pred_check
      _
    $region95: #{tpu_custom_call.1} parent=1 // pred_check_branch
      %78 = sbr.rel (0) target = $region97
    $region96: #{tpu_custom_call.1} parent=1 // pred_region
      _
    $region97: #{tpu_custom_call.1} parent=1 // pred_fallthru
      _
    // Predicated region
    $region98: #{tpu_custom_call.1} parent=1 // pred_check
      _
    $region99: #{tpu_custom_call.1} parent=1 // pred_check_branch
      %80 = sbr.rel (0) target = $region101
    $region100: #{tpu_custom_call.1} parent=1 // pred_region
      _
    $region101: #{tpu_custom_call.1} parent=1 // pred_fallthru
      _
    %v81 = vld [vmem:[%s0] sm:$0xff]
    %v82 = vld [vmem:[%s0 + $0x8] sm:$0xff]
    %v83 = vld [vmem:[%s1] sm:$0xff]
    %v84 = vld [vmem:[%s1 + $0x8] sm:$0xff]
    %v85 = vld [vmem:[%s1 + $0x10] sm:$0xff]
    %v86 = vld [vmem:[%s1 + $0x18] sm:$0xff]
    %v87 = vld [vmem:[%s1 + $0x20] sm:$0xff]
    %v88 = vld [vmem:[%s2] sm:$0xff]
    %v89 = vld [vmem:[%s2 + $0x8] sm:$0xff]
    %v90 = vld [vmem:[%s2 + $0x10] sm:$0xff]
    %v91 = vld [vmem:[%s2 + $0x18] sm:$0xff]
    %v92 = vld [vmem:[%s2 + $0x20] sm:$0xff]
    %v93 = vld [vmem:[%s3] sm:$0xff]
    %v94 = vld [vmem:[%s3 + $0x8] sm:$0xff]
    %v95 = vld [vmem:[%s8] sm:$0xff]
    %vm96 = vcmask 64512
    %v98 = vsel %vm96, %v81, 0
    %v101 = vsel %vm96, %v82, 0
    %103 = vmatprep.subr.mxu0 0.0
    %104 = vmatpush1.msra.mxu0 %v95
    %105 = vmatprep.subr.mxu0 0.0
    %106 = vmatpush1.msra.mxu0 0.0
    %107 = vmatprep.subr.mxu0 0.0
    %108 = vmatpush1.msra.mxu0 0.0
    %109 = vmatprep.subr.mxu0 0.0
    %110 = vmatpush1.msra.mxu0 0.0
    %111 = vmatprep.subr.mxu0 0.0
    %112 = vmatpush1.msra.mxu0 0.0
    %113 = vmatprep.subr.mxu0 0.0
    %114 = vmatpush1.msra.mxu0 0.0
    %115 = vmatprep.subr.mxu0 0.0
    %116 = vmatpush1.msra.mxu0 0.0
    %117 = vmatprep.subr.mxu0 0.0
    %118 = vmatpush1.msra.mxu0 0.0
    %119 = vmatprep.subr.mxu0 0.0
    %120 = vmatpush1.msra.mxu0 0.0
    %121 = vmatprep.subr.mxu0 0.0
    %122 = vmatpush1.msra.mxu0 0.0
    %123 = vmatprep.subr.mxu0 0.0
    %124 = vmatpush1.msra.mxu0 0.0
    %125 = vmatprep.subr.mxu0 0.0
    %126 = vmatpush1.msra.mxu0 0.0
    %127 = vmatprep.subr.mxu0 0.0
    %128 = vmatpush1.msra.mxu0 0.0
    %129 = vmatprep.subr.mxu0 0.0
    %130 = vmatpush1.msra.mxu0 0.0
    %131 = vmatprep.subr.mxu0 0.0
    %132 = vmatpush1.msra.mxu0 0.0
    %133 = vmatprep.subr.mxu0 0.0
    %134 = vmatpush1.msra.mxu0 0.0
    %135 = vmatprep.subr.mxu0 0.0
    %136 = vmatpush1.msra.mxu0 0.0
    %137 = vmatprep.subr.mxu0 0.0
    %138 = vmatpush1.msra.mxu0 0.0
    %139 = vmatprep.subr.mxu0 0.0
    %140 = vmatpush1.msra.mxu0 0.0
    %141 = vmatprep.subr.mxu0 0.0
    %142 = vmatpush1.msra.mxu0 0.0
    %143 = vmatprep.subr.mxu0 0.0
    %144 = vmatpush1.msra.mxu0 0.0
    %145 = vmatprep.subr.mxu0 0.0
    %146 = vmatpush1.msra.mxu0 0.0
    %147 = vmatprep.subr.mxu0 0.0
    %148 = vmatpush1.msra.mxu0 0.0
    %149 = vmatprep.subr.mxu0 0.0
    %150 = vmatpush1.msra.mxu0 0.0
    %151 = vmatprep.subr.mxu0 0.0
    %152 = vmatpush1.msra.mxu0 0.0
    %153 = vmatprep.subr.mxu0 0.0
    %154 = vmatpush1.msra.mxu0 0.0
    %155 = vmatprep.subr.mxu0 0.0
    %156 = vmatpush1.msra.mxu0 0.0
    %157 = vmatprep.subr.mxu0 0.0
    %158 = vmatpush1.msra.mxu0 0.0
    %159 = vmatprep.subr.mxu0 0.0
    %160 = vmatpush1.msra.mxu0 0.0
    %161 = vmatprep.subr.mxu0 0.0
    %162 = vmatpush1.msra.mxu0 0.0
    %163 = vmatprep.subr.mxu0 0.0
    %164 = vmatpush1.msra.mxu0 0.0
    %165 = vmatprep.subr.mxu0 0.0
    %166 = vmatpush1.msra.mxu0 0.0
    %167 = vmatprep.mubr.f32.mxu0 0.0
    %168 = vmatmul.mubr.f32.gmra.mrb[0].mxu0 %v98
    %v169 = vpop.f32.mrb[0].mxu0
    %v170 = vadd.f32 0.0, %v169
    %v171 = vpop.f32.mrb[0].mxu0
    %172 = vmatprep.mubr.f32.mxu0 0.0
    %173 = vmatmul.mubr.f32.gmra.mrb[0].mxu0 %v101
    %v174 = vpop.f32.mrb[0].mxu0
    %v175 = vadd.f32 0.0, %v174
    %v176 = vpop.f32.mrb[0].mxu0
    %177 = vdwg.mxu0
    %v178 = vld [vmem:[%s9] sm:$0xff]
    %179 = vmatprep.subr.mxu0 0.0
    %180 = vmatpush1.msra.mxu0 %v178
    %181 = vmatprep.subr.mxu0 0.0
    %182 = vmatpush1.msra.mxu0 0.0
    %183 = vmatprep.subr.mxu0 0.0
    %184 = vmatpush1.msra.mxu0 0.0
    %185 = vmatprep.subr.mxu0 0.0
    %186 = vmatpush1.msra.mxu0 0.0
    %187 = vmatprep.subr.mxu0 0.0
    %188 = vmatpush1.msra.mxu0 0.0
    %189 = vmatprep.subr.mxu0 0.0
    %190 = vmatpush1.msra.mxu0 0.0
    %191 = vmatprep.subr.mxu0 0.0
    %192 = vmatpush1.msra.mxu0 0.0
    %193 = vmatprep.subr.mxu0 0.0
    %194 = vmatpush1.msra.mxu0 0.0
    %195 = vmatprep.subr.mxu0 0.0
    %196 = vmatpush1.msra.mxu0 0.0
    %197 = vmatprep.subr.mxu0 0.0
    %198 = vmatpush1.msra.mxu0 0.0
    %199 = vmatprep.subr.mxu0 0.0
    %200 = vmatpush1.msra.mxu0 0.0
    %201 = vmatprep.subr.mxu0 0.0
    %202 = vmatpush1.msra.mxu0 0.0
    %203 = vmatprep.subr.mxu0 0.0
    %204 = vmatpush1.msra.mxu0 0.0
    %205 = vmatprep.subr.mxu0 0.0
    %206 = vmatpush1.msra.mxu0 0.0
    %207 = vmatprep.subr.mxu0 0.0
    %208 = vmatpush1.msra.mxu0 0.0
    %209 = vmatprep.subr.mxu0 0.0
    %210 = vmatpush1.msra.mxu0 0.0
    %211 = vmatprep.subr.mxu0 0.0
    %212 = vmatpush1.msra.mxu0 0.0
    %213 = vmatprep.subr.mxu0 0.0
    %214 = vmatpush1.msra.mxu0 0.0
    %215 = vmatprep.subr.mxu0 0.0
    %216 = vmatpush1.msra.mxu0 0.0
    %217 = vmatprep.subr.mxu0 0.0
    %218 = vmatpush1.msra.mxu0 0.0
    %219 = vmatprep.subr.mxu0 0.0
    %220 = vmatpush1.msra.mxu0 0.0
    %221 = vmatprep.subr.mxu0 0.0
    %222 = vmatpush1.msra.mxu0 0.0
    %223 = vmatprep.subr.mxu0 0.0
    %224 = vmatpush1.msra.mxu0 0.0
    %225 = vmatprep.subr.mxu0 0.0
    %226 = vmatpush1.msra.mxu0 0.0
    %227 = vmatprep.subr.mxu0 0.0
    %228 = vmatpush1.msra.mxu0 0.0
    %229 = vmatprep.subr.mxu0 0.0
    %230 = vmatpush1.msra.mxu0 0.0
    %231 = vmatprep.subr.mxu0 0.0
    %232 = vmatpush1.msra.mxu0 0.0
    %233 = vmatprep.subr.mxu0 0.0
    %234 = vmatpush1.msra.mxu0 0.0
    %235 = vmatprep.subr.mxu0 0.0
    %236 = vmatpush1.msra.mxu0 0.0
    %237 = vmatprep.subr.mxu0 0.0
    %238 = vmatpush1.msra.mxu0 0.0
    %239 = vmatprep.subr.mxu0 0.0
    %240 = vmatpush1.msra.mxu0 0.0
    %241 = vmatprep.subr.mxu0 0.0
    %242 = vmatpush1.msra.mxu0 0.0
    %243 = vmatprep.mubr.f32.mxu0 0.0
    %244 = vmatmul.mubr.f32.gmra.mrb[0].mxu0 %v98
    %v245 = vpop.f32.mrb[0].mxu0
    %v246 = vadd.f32 0.0, %v245
    %v247 = vpop.f32.mrb[0].mxu0
    %248 = vmatprep.mubr.f32.mxu0 0.0
    %249 = vmatmul.mubr.f32.gmra.mrb[0].mxu0 %v101
    %v250 = vpop.f32.mrb[0].mxu0
    %v251 = vadd.f32 0.0, %v250
    %v252 = vpop.f32.mrb[0].mxu0
    %253 = vdwg.mxu0
    %v254 = vld [vmem:[%s5] sm:$0xff]
    %v255 = vld [vmem:[%s5 + $0x8] sm:$0xff]
    %v256 = vld [vmem:[%s5 + $0x10] sm:$0xff]
    %v257 = vld [vmem:[%s5 + $0x18] sm:$0xff]
    %v258 = vld [vmem:[%s5 + $0x20] sm:$0xff]
    %v259 = vld [vmem:[%s6] sm:$0x1]
    %261 = vset.pattern.permute.xlu0 0
    %262 = vperm.xlu0 %261, %v254
    %v263 = vpop.permute.xlu0 %262
    %266 = vset.pattern.permute.xlu0 0
    %267 = vperm.xlu0 %266, %v255
    %v268 = vpop.permute.xlu0 %267
    %271 = vset.pattern.permute.xlu0 0
    %272 = vperm.xlu0 %271, %v256
    %v273 = vpop.permute.xlu0 %272
    %276 = vset.pattern.permute.xlu0 0
    %277 = vperm.xlu0 %276, %v257
    %v278 = vpop.permute.xlu0 %277
    %281 = vset.pattern.permute.xlu0 0
    %282 = vperm.xlu0 %281, %v258
    %v283 = vpop.permute.xlu0 %282
    %v286 = vlaneseq
    %v287 = vshrl.u32 %v286, 7
    %v288 = vsub.s32 0, %v287
    %v289 = vrot.slane %v259, %v288
    %v291 = vmul.f32 %v263, %v289
    %v292 = vmul.f32 %v268, %v289
    %v293 = vmul.f32 %v273, %v289
    %v294 = vmul.f32 %v278, %v289
    %v295 = vmul.f32 %v283, %v289
    %v296 = vld [vmem:[%s7] sm:$0x1]
    %v298 = vlaneseq
    %v299 = vshrl.u32 %v298, 7
    %v300 = vsub.s32 0, %v299
    %v301 = vrot.slane %v296, %v300
    %v303 = vadd.f32 %v291, %v301
    %v304 = vadd.f32 %v292, %v301
    %v305 = vadd.f32 %v293, %v301
    %v306 = vadd.f32 %v294, %v301
    %v307 = vadd.f32 %v295, %v301
    %vm308 = vcmask 130048
    %v310 = vsel %vm308, %v83, 0
    %v313 = vsel %vm308, %v84, 0
    %v316 = vsel %vm308, %v85, 0
    %v319 = vsel %vm308, %v86, 0
    %v322 = vsel %vm308, %v87, 0
    %324 = vmatprep.subr.mxu0 0.0
    %325 = vmatpush1.msra.mxu0 %v246
    %326 = vmatprep.subr.mxu0 0.0
    %327 = vmatpush1.msra.mxu0 %v251
    %328 = vmatprep.subr.mxu0 0.0
    %329 = vmatpush1.msra.mxu0 0.0
    %330 = vmatprep.subr.mxu0 0.0
    %331 = vmatpush1.msra.mxu0 0.0
    %332 = vmatprep.subr.mxu0 0.0
    %333 = vmatpush1.msra.mxu0 0.0
    %334 = vmatprep.subr.mxu0 0.0
    %335 = vmatpush1.msra.mxu0 0.0
    %336 = vmatprep.subr.mxu0 0.0
    %337 = vmatpush1.msra.mxu0 0.0
    %338 = vmatprep.subr.mxu0 0.0
    %339 = vmatpush1.msra.mxu0 0.0
    %340 = vmatprep.subr.mxu0 0.0
    %341 = vmatpush1.msra.mxu0 0.0
    %342 = vmatprep.subr.mxu0 0.0
    %343 = vmatpush1.msra.mxu0 0.0
    %344 = vmatprep.subr.mxu0 0.0
    %345 = vmatpush1.msra.mxu0 0.0
    %346 = vmatprep.subr.mxu0 0.0
    %347 = vmatpush1.msra.mxu0 0.0
    %348 = vmatprep.subr.mxu0 0.0
    %349 = vmatpush1.msra.mxu0 0.0
    %350 = vmatprep.subr.mxu0 0.0
    %351 = vmatpush1.msra.mxu0 0.0
    %352 = vmatprep.subr.mxu0 0.0
    %353 = vmatpush1.msra.mxu0 0.0
    %354 = vmatprep.subr.mxu0 0.0
    %355 = vmatpush1.msra.mxu0 0.0
    %356 = vmatprep.subr.mxu0 0.0
    %357 = vmatpush1.msra.mxu0 0.0
    %358 = vmatprep.subr.mxu0 0.0
    %359 = vmatpush1.msra.mxu0 0.0
    %360 = vmatprep.subr.mxu0 0.0
    %361 = vmatpush1.msra.mxu0 0.0
    %362 = vmatprep.subr.mxu0 0.0
    %363 = vmatpush1.msra.mxu0 0.0
    %364 = vmatprep.subr.mxu0 0.0
    %365 = vmatpush1.msra.mxu0 0.0
    %366 = vmatprep.subr.mxu0 0.0
    %367 = vmatpush1.msra.mxu0 0.0
    %368 = vmatprep.subr.mxu0 0.0
    %369 = vmatpush1.msra.mxu0 0.0
    %370 = vmatprep.subr.mxu0 0.0
    %371 = vmatpush1.msra.mxu0 0.0
    %372 = vmatprep.subr.mxu0 0.0
    %373 = vmatpush1.msra.mxu0 0.0
    %374 = vmatprep.subr.mxu0 0.0
    %375 = vmatpush1.msra.mxu0 0.0
    %376 = vmatprep.subr.mxu0 0.0
    %377 = vmatpush1.msra.mxu0 0.0
    %378 = vmatprep.subr.mxu0 0.0
    %379 = vmatpush1.msra.mxu0 0.0
    %380 = vmatprep.subr.mxu0 0.0
    %381 = vmatpush1.msra.mxu0 0.0
    %382 = vmatprep.subr.mxu0 0.0
    %383 = vmatpush1.msra.mxu0 0.0
    %384 = vmatprep.subr.mxu0 0.0
    %385 = vmatpush1.msra.mxu0 0.0
    %386 = vmatprep.subr.mxu0 0.0
    %387 = vmatpush1.msra.mxu0 0.0
    %388 = vmatprep.mubr.f32.mxu0 0.0
    %389 = vmatmul.mubr.f32.gmra.mrb[0].mxu0 %v310
    %v390 = vpop.f32.mrb[0].mxu0
    %v391 = vadd.f32 0.0, %v390
    %v392 = vpop.f32.mrb[0].mxu0
    %393 = vmatprep.mubr.f32.mxu0 0.0
    %394 = vmatmul.mubr.f32.gmra.mrb[0].mxu0 %v313
    %v395 = vpop.f32.mrb[0].mxu0
    %v396 = vadd.f32 0.0, %v395
    %v397 = vpop.f32.mrb[0].mxu0
    %398 = vmatprep.mubr.f32.mxu0 0.0
    %399 = vmatmul.mubr.f32.gmra.mrb[0].mxu0 %v316
    %v400 = vpop.f32.mrb[0].mxu0
    %v401 = vadd.f32 0.0, %v400
    %v402 = vpop.f32.mrb[0].mxu0
    %403 = vmatprep.mubr.f32.mxu0 0.0
    %404 = vmatmul.mubr.f32.gmra.mrb[0].mxu0 %v319
    %v405 = vpop.f32.mrb[0].mxu0
    %v406 = vadd.f32 0.0, %v405
    %v407 = vpop.f32.mrb[0].mxu0
    %408 = vmatprep.mubr.f32.mxu0 0.0
    %409 = vmatmul.mubr.f32.gmra.mrb[0].mxu0 %v322
    %v410 = vpop.f32.mrb[0].mxu0
    %v411 = vadd.f32 0.0, %v410
    %v412 = vpop.f32.mrb[0].mxu0
    %413 = vdwg.mxu0
    %v415 = vsel %vm308, %v88, 0
    %v418 = vsel %vm308, %v89, 0
    %v421 = vsel %vm308, %v90, 0
    %v424 = vsel %vm308, %v91, 0
    %v427 = vsel %vm308, %v92, 0
    %429 = vmatprep.subr.mxu0 0.0
    %430 = vmatpush1.msra.mxu0 %v170
    %431 = vmatprep.subr.mxu0 0.0
    %432 = vmatpush1.msra.mxu0 %v175
    %433 = vmatprep.subr.mxu0 0.0
    %434 = vmatpush1.msra.mxu0 0.0
    %435 = vmatprep.subr.mxu0 0.0
    %436 = vmatpush1.msra.mxu0 0.0
    %437 = vmatprep.subr.mxu0 0.0
    %438 = vmatpush1.msra.mxu0 0.0
    %439 = vmatprep.subr.mxu0 0.0
    %440 = vmatpush1.msra.mxu0 0.0
    %441 = vmatprep.subr.mxu0 0.0
    %442 = vmatpush1.msra.mxu0 0.0
    %443 = vmatprep.subr.mxu0 0.0
    %444 = vmatpush1.msra.mxu0 0.0
    %445 = vmatprep.subr.mxu0 0.0
    %446 = vmatpush1.msra.mxu0 0.0
    %447 = vmatprep.subr.mxu0 0.0
    %448 = vmatpush1.msra.mxu0 0.0
    %449 = vmatprep.subr.mxu0 0.0
    %450 = vmatpush1.msra.mxu0 0.0
    %451 = vmatprep.subr.mxu0 0.0
    %452 = vmatpush1.msra.mxu0 0.0
    %453 = vmatprep.subr.mxu0 0.0
    %454 = vmatpush1.msra.mxu0 0.0
    %455 = vmatprep.subr.mxu0 0.0
    %456 = vmatpush1.msra.mxu0 0.0
    %457 = vmatprep.subr.mxu0 0.0
    %458 = vmatpush1.msra.mxu0 0.0
    %459 = vmatprep.subr.mxu0 0.0
    %460 = vmatpush1.msra.mxu0 0.0
    %461 = vmatprep.subr.mxu0 0.0
    %462 = vmatpush1.msra.mxu0 0.0
    %463 = vmatprep.subr.mxu0 0.0
    %464 = vmatpush1.msra.mxu0 0.0
    %465 = vmatprep.subr.mxu0 0.0
    %466 = vmatpush1.msra.mxu0 0.0
    %467 = vmatprep.subr.mxu0 0.0
    %468 = vmatpush1.msra.mxu0 0.0
    %469 = vmatprep.subr.mxu0 0.0
    %470 = vmatpush1.msra.mxu0 0.0
    %471 = vmatprep.subr.mxu0 0.0
    %472 = vmatpush1.msra.mxu0 0.0
    %473 = vmatprep.subr.mxu0 0.0
    %474 = vmatpush1.msra.mxu0 0.0
    %475 = vmatprep.subr.mxu0 0.0
    %476 = vmatpush1.msra.mxu0 0.0
    %477 = vmatprep.subr.mxu0 0.0
    %478 = vmatpush1.msra.mxu0 0.0
    %479 = vmatprep.subr.mxu0 0.0
    %480 = vmatpush1.msra.mxu0 0.0
    %481 = vmatprep.subr.mxu0 0.0
    %482 = vmatpush1.msra.mxu0 0.0
    %483 = vmatprep.subr.mxu0 0.0
    %484 = vmatpush1.msra.mxu0 0.0
    %485 = vmatprep.subr.mxu0 0.0
    %486 = vmatpush1.msra.mxu0 0.0
    %487 = vmatprep.subr.mxu0 0.0
    %488 = vmatpush1.msra.mxu0 0.0
    %489 = vmatprep.subr.mxu0 0.0
    %490 = vmatpush1.msra.mxu0 0.0
    %491 = vmatprep.subr.mxu0 0.0
    %492 = vmatpush1.msra.mxu0 0.0
    %493 = vmatprep.mubr.f32.mxu0 0.0
    %494 = vmatmul.mubr.f32.gmra.mrb[0].mxu0 %v415
    %v495 = vpop.f32.mrb[0].mxu0
    %v496 = vadd.f32 %v391, %v495
    %v497 = vpop.f32.mrb[0].mxu0
    %498 = vmatprep.mubr.f32.mxu0 0.0
    %499 = vmatmul.mubr.f32.gmra.mrb[0].mxu0 %v418
    %v500 = vpop.f32.mrb[0].mxu0
    %v501 = vadd.f32 %v396, %v500
    %v502 = vpop.f32.mrb[0].mxu0
    %503 = vmatprep.mubr.f32.mxu0 0.0
    %504 = vmatmul.mubr.f32.gmra.mrb[0].mxu0 %v421
    %v505 = vpop.f32.mrb[0].mxu0
    %v506 = vadd.f32 %v401, %v505
    %v507 = vpop.f32.mrb[0].mxu0
    %508 = vmatprep.mubr.f32.mxu0 0.0
    %509 = vmatmul.mubr.f32.gmra.mrb[0].mxu0 %v424
    %v510 = vpop.f32.mrb[0].mxu0
    %v511 = vadd.f32 %v406, %v510
    %v512 = vpop.f32.mrb[0].mxu0
    %513 = vmatprep.mubr.f32.mxu0 0.0
    %514 = vmatmul.mubr.f32.gmra.mrb[0].mxu0 %v427
    %v515 = vpop.f32.mrb[0].mxu0
    %v516 = vadd.f32 %v411, %v515
    %v517 = vpop.f32.mrb[0].mxu0
    %518 = vdwg.mxu0
    %v519 = vadd.f32 %v496, %v303
    %v520 = vadd.f32 %v501, %v304
    %v521 = vadd.f32 %v506, %v305
    %v522 = vadd.f32 %v511, %v306
    %v523 = vadd.f32 %v516, %v307
    %v524 = vld [vmem:[%s10] sm:$0x1]
    %v526 = vlaneseq
    %v527 = vshrl.u32 %v526, 7
    %v528 = vsub.s32 0, %v527
    %v529 = vrot.slane %v524, %v528
    %v531 = vadd.f32 %v519, %v529
    %v532 = vadd.f32 %v520, %v529
    %v533 = vadd.f32 %v521, %v529
    %v534 = vadd.f32 %v522, %v529
    %v535 = vadd.f32 %v523, %v529
    %vm536 = vcmask 326656
    %v537 = vsel %vm536, %v93, 0.0
    %538 = vadd.xlane.f32.xlu0 %v537
    %v539 = vpop.xlane.xlu0 %538
    %v540 = vsel %vm536, %v94, 0.0
    %541 = vadd.xlane.f32.xlu0 %v540
    %v542 = vpop.xlane.xlu0 %541
    %v543 = vmax.f32 %v539, 1.0
    %v544 = vmax.f32 %v542, 1.0
    %v545 = vrcp.pop %v543
    %v546 = vmul.f32 1.0, %v545
    %v547 = vrcp.pop %v544
    %v548 = vmul.f32 1.0, %v547
    %v549 = vmul.f32 %v531, %v531
    %v550 = vmul.f32 %v532, %v532
    %v551 = vmul.f32 %v533, %v533
    %v552 = vmul.f32 %v534, %v534
    %v553 = vmul.f32 %v535, %v535
    %559 = vrot.lane.b32.xlu0 %v549, 64
    %v560 = vpop.permute.xlu0 %559
    %561 = vrot.lane.b32.xlu0 %v550, 64
    %v562 = vpop.permute.xlu0 %561
    %563 = vrot.lane.b32.xlu0 %v551, 64
    %v564 = vpop.permute.xlu0 %563
    %565 = vrot.lane.b32.xlu0 %v552, 64
    %v566 = vpop.permute.xlu0 %565
    %567 = vrot.lane.b32.xlu0 %v553, 64
    %v568 = vpop.permute.xlu0 %567
    %vm574 = vcmask 523264
    %v575 = vsel %vm574, %v531, %v560
    %v576 = vsel %vm574, %v532, %v562
    %v577 = vsel %vm574, %v533, %v564
    %v578 = vsel %vm574, %v534, %v566
    %v579 = vsel %vm574, %v535, %v568
    %v581 = vsel %vm536, %v93, 0
    %v584 = vsel %vm536, %v94, 0
    %586 = vmatprep.subr.mxu0 0.0
    %587 = vmatpush1.msra.mxu0 %v575
    %588 = vmatprep.subr.mxu0 0.0
    %589 = vmatpush1.msra.mxu0 %v576
    %590 = vmatprep.subr.mxu0 0.0
    %591 = vmatpush1.msra.mxu0 %v577
    %592 = vmatprep.subr.mxu0 0.0
    %593 = vmatpush1.msra.mxu0 %v578
    %594 = vmatprep.subr.mxu0 0.0
    %595 = vmatpush1.msra.mxu0 %v579
    %596 = vmatprep.subr.mxu0 0.0
    %597 = vmatpush1.msra.mxu0 0.0
    %598 = vmatprep.subr.mxu0 0.0
    %599 = vmatpush1.msra.mxu0 0.0
    %600 = vmatprep.subr.mxu0 0.0
    %601 = vmatpush1.msra.mxu0 0.0
    %602 = vmatprep.subr.mxu0 0.0
    %603 = vmatpush1.msra.mxu0 0.0
    %604 = vmatprep.subr.mxu0 0.0
    %605 = vmatpush1.msra.mxu0 0.0
    %606 = vmatprep.subr.mxu0 0.0
    %607 = vmatpush1.msra.mxu0 0.0
    %608 = vmatprep.subr.mxu0 0.0
    %609 = vmatpush1.msra.mxu0 0.0
    %610 = vmatprep.subr.mxu0 0.0
    %611 = vmatpush1.msra.mxu0 0.0
    %612 = vmatprep.subr.mxu0 0.0
    %613 = vmatpush1.msra.mxu0 0.0
    %614 = vmatprep.subr.mxu0 0.0
    %615 = vmatpush1.msra.mxu0 0.0
    %616 = vmatprep.subr.mxu0 0.0
    %617 = vmatpush1.msra.mxu0 0.0
    %618 = vmatprep.subr.mxu0 0.0
    %619 = vmatpush1.msra.mxu0 0.0
    %620 = vmatprep.subr.mxu0 0.0
    %621 = vmatpush1.msra.mxu0 0.0
    %622 = vmatprep.subr.mxu0 0.0
    %623 = vmatpush1.msra.mxu0 0.0
    %624 = vmatprep.subr.mxu0 0.0
    %625 = vmatpush1.msra.mxu0 0.0
    %626 = vmatprep.subr.mxu0 0.0
    %627 = vmatpush1.msra.mxu0 0.0
    %628 = vmatprep.subr.mxu0 0.0
    %629 = vmatpush1.msra.mxu0 0.0
    %630 = vmatprep.subr.mxu0 0.0
    %631 = vmatpush1.msra.mxu0 0.0
    %632 = vmatprep.subr.mxu0 0.0
    %633 = vmatpush1.msra.mxu0 0.0
    %634 = vmatprep.subr.mxu0 0.0
    %635 = vmatpush1.msra.mxu0 0.0
    %636 = vmatprep.subr.mxu0 0.0
    %637 = vmatpush1.msra.mxu0 0.0
    %638 = vmatprep.subr.mxu0 0.0
    %639 = vmatpush1.msra.mxu0 0.0
    %640 = vmatprep.subr.mxu0 0.0
    %641 = vmatpush1.msra.mxu0 0.0
    %642 = vmatprep.subr.mxu0 0.0
    %643 = vmatpush1.msra.mxu0 0.0
    %644 = vmatprep.subr.mxu0 0.0
    %645 = vmatpush1.msra.mxu0 0.0
    %646 = vmatprep.subr.mxu0 0.0
    %647 = vmatpush1.msra.mxu0 0.0
    %648 = vmatprep.subr.mxu0 0.0
    %649 = vmatpush1.msra.mxu0 0.0
    %650 = vmatprep.mubr.f32.mxu0 0.0
    %651 = vmatmul.mubr.f32.gmra.mrb[0].mxu0 %v581
    %v652 = vpop.f32.mrb[0].mxu0
    %v653 = vadd.f32 0.0, %v652
    %v654 = vpop.f32.mrb[0].mxu0
    %655 = vmatprep.mubr.f32.mxu0 0.0
    %656 = vmatmul.mubr.f32.gmra.mrb[0].mxu0 %v584
    %v657 = vpop.f32.mrb[0].mxu0
    %v658 = vadd.f32 0.0, %v657
    %v659 = vpop.f32.mrb[0].mxu0
    %660 = vdwg.mxu0
    %v661 = vmul.f32 %v653, %v546
    %v662 = vmul.f32 %v658, %v548
    %v663 = vmul.f32 %v661, %v661
    %v664 = vmul.f32 %v662, %v662
    %667 = vrot.lane.b32.xlu0 %v663, 64
    %v668 = vpop.permute.xlu0 %667
    %669 = vrot.lane.b32.xlu0 %v664, 64
    %v670 = vpop.permute.xlu0 %669
    %v673 = vsub.f32 %v661, %v668
    %v674 = vsub.f32 %v662, %v670
    %v675 = vmax.f32 %v673, 0.0
    %v676 = vmax.f32 %v674, 0.0
    %v677 = vadd.f32 %v675, 1e-05
    %v678 = vadd.f32 %v676, 1e-05
    %v679 = vrsqrt.pop %v677
    %v680 = vmul.f32 %v677, %v679
    %vm681 = vcmp.eq.f32.partialorder %v677, inf
    %v682 = vsel %vm681, %v677, %v680
    %vm683 = vcmp.eq.f32.partialorder %v677, 0.0
    %v684 = vand.u32 %v677, 2147483648
    %v685 = vsel %vm683, %v684, %v682
    %v686 = vrsqrt.pop %v678
    %v687 = vmul.f32 %v678, %v686
    %vm688 = vcmp.eq.f32.partialorder %v678, inf
    %v689 = vsel %vm688, %v678, %v687
    %vm690 = vcmp.eq.f32.partialorder %v678, 0.0
    %v691 = vand.u32 %v678, 2147483648
    %v692 = vsel %vm690, %v691, %v689
    %v693 = vld [vmem:[%s4] sm:$0xff]
    %v694 = vld [vmem:[%s4 + $0x8] sm:$0xff]
    %v695 = vld [vmem:[%s4 + $0x10] sm:$0xff]
    %v696 = vld [vmem:[%s4 + $0x18] sm:$0xff]
    %v697 = vld [vmem:[%s4 + $0x20] sm:$0xff]
    %v698 = vld [vmem:[%s4 + $0x28] sm:$0xff]
    %v699 = vld [vmem:[%s4 + $0x30] sm:$0xff]
    %v700 = vld [vmem:[%s4 + $0x38] sm:$0xff]
    %v701 = vld [vmem:[%s4 + $0x40] sm:$0xff]
    %v702 = vld [vmem:[%s4 + $0x48] sm:$0xff]
    %v703 = vld [vmem:[%s4 + $0x50] sm:$0xff]
    %v704 = vld [vmem:[%s4 + $0x58] sm:$0xff]
    %v705 = vld [vmem:[%s4 + $0x60] sm:$0xff]
    %v706 = vld [vmem:[%s4 + $0x68] sm:$0xff]
    %v707 = vld [vmem:[%s4 + $0x70] sm:$0xff]
    %v708 = vld [vmem:[%s4 + $0x78] sm:$0xff]
    %v709 = vld [vmem:[%s4 + $0x80] sm:$0xff]
    %v710 = vld [vmem:[%s4 + $0x88] sm:$0xff]
    %v711 = vld [vmem:[%s4 + $0x90] sm:$0xff]
    %v712 = vld [vmem:[%s4 + $0x98] sm:$0xff]
    %v713 = vld [vmem:[%s4 + $0xa0] sm:$0xff]
    %v714 = vld [vmem:[%s4 + $0xa8] sm:$0xff]
    %v715 = vld [vmem:[%s4 + $0xb0] sm:$0xff]
    %v716 = vld [vmem:[%s4 + $0xb8] sm:$0xff]
    %v717 = vld [vmem:[%s4 + $0xc0] sm:$0xff]
    %v718 = vld [vmem:[%s4 + $0xc8] sm:$0xff]
    %v719 = vld [vmem:[%s4 + $0xd0] sm:$0xff]
    %v720 = vld [vmem:[%s4 + $0xd8] sm:$0xff]
    %v721 = vld [vmem:[%s4 + $0xe0] sm:$0xff]
    %v722 = vld [vmem:[%s4 + $0xe8] sm:$0xff]
    %v723 = vld [vmem:[%s4 + $0xf0] sm:$0xff]
    %v724 = vld [vmem:[%s4 + $0xf8] sm:$0xff]
    %v725 = vld [vmem:[%s4 + $0x100] sm:$0xff]
    %v726 = vld [vmem:[%s4 + $0x108] sm:$0xff]
    %v727 = vld [vmem:[%s4 + $0x110] sm:$0xff]
    %v728 = vld [vmem:[%s4 + $0x118] sm:$0xff]
    %v729 = vld [vmem:[%s4 + $0x120] sm:$0xff]
    %v730 = vld [vmem:[%s4 + $0x128] sm:$0xff]
    %v731 = vld [vmem:[%s4 + $0x130] sm:$0xff]
    %v732 = vld [vmem:[%s4 + $0x138] sm:$0xff]
    %v733 = vld [vmem:[%s4 + $0x140] sm:$0xff]
    %v734 = vld [vmem:[%s4 + $0x148] sm:$0xff]
    %v735 = vld [vmem:[%s4 + $0x150] sm:$0xff]
    %v736 = vld [vmem:[%s4 + $0x158] sm:$0xff]
    %v737 = vld [vmem:[%s4 + $0x160] sm:$0xff]
    %v738 = vld [vmem:[%s4 + $0x168] sm:$0xff]
    %v739 = vld [vmem:[%s4 + $0x170] sm:$0xff]
    %v740 = vld [vmem:[%s4 + $0x178] sm:$0xff]
    %v741 = vld [vmem:[%s4 + $0x180] sm:$0xff]
    %v742 = vld [vmem:[%s4 + $0x188] sm:$0xff]
    %v743 = vld [vmem:[%s4 + $0x190] sm:$0xff]
    %v744 = vld [vmem:[%s4 + $0x198] sm:$0xff]
    %v745 = vld [vmem:[%s4 + $0x1a0] sm:$0xff]
    %v746 = vld [vmem:[%s4 + $0x1a8] sm:$0xff]
    %v747 = vld [vmem:[%s4 + $0x1b0] sm:$0xff]
    %v748 = vld [vmem:[%s4 + $0x1b8] sm:$0xff]
    %v749 = vld [vmem:[%s4 + $0x1c0] sm:$0xff]
    %v750 = vld [vmem:[%s4 + $0x1c8] sm:$0xff]
    %v751 = vld [vmem:[%s4 + $0x1d0] sm:$0xff]
    %v752 = vld [vmem:[%s4 + $0x1d8] sm:$0xff]
    %v753 = vld [vmem:[%s4 + $0x1e0] sm:$0xff]
    %v754 = vld [vmem:[%s4 + $0x1e8] sm:$0xff]
    %v755 = vld [vmem:[%s4 + $0x1f0] sm:$0xff]
    %v756 = vld [vmem:[%s4 + $0x1f8] sm:$0xff]
    %v757 = vld [vmem:[%s4 + $0x200] sm:$0xff]
    %v758 = vld [vmem:[%s4 + $0x208] sm:$0xff]
    %v759 = vld [vmem:[%s4 + $0x210] sm:$0xff]
    %v760 = vld [vmem:[%s4 + $0x218] sm:$0xff]
    %v761 = vld [vmem:[%s4 + $0x220] sm:$0xff]
    %v762 = vld [vmem:[%s4 + $0x228] sm:$0xff]
    %v763 = vld [vmem:[%s4 + $0x230] sm:$0xff]
    %v764 = vld [vmem:[%s4 + $0x238] sm:$0xff]
    %v765 = vld [vmem:[%s4 + $0x240] sm:$0xff]
    %v766 = vld [vmem:[%s4 + $0x248] sm:$0xff]
    %v767 = vld [vmem:[%s4 + $0x250] sm:$0xff]
    %v768 = vld [vmem:[%s4 + $0x258] sm:$0xff]
    %v769 = vld [vmem:[%s4 + $0x260] sm:$0xff]
    %v770 = vld [vmem:[%s4 + $0x268] sm:$0xff]
    %v771 = vld [vmem:[%s4 + $0x270] sm:$0xff]
    %v772 = vld [vmem:[%s4 + $0x278] sm:$0xff]
    %774 = vset.pattern.permute.xlu0 0
    %775 = vperm.xlu0 %774, %v693
    %v776 = vpop.permute.xlu0 %775
    %779 = vset.pattern.permute.xlu0 0
    %780 = vperm.xlu0 %779, %v694
    %v781 = vpop.permute.xlu0 %780
    %784 = vset.pattern.permute.xlu0 0
    %785 = vperm.xlu0 %784, %v695
    %v786 = vpop.permute.xlu0 %785
    %789 = vset.pattern.permute.xlu0 0
    %790 = vperm.xlu0 %789, %v696
    %v791 = vpop.permute.xlu0 %790
    %794 = vset.pattern.permute.xlu0 0
    %795 = vperm.xlu0 %794, %v697
    %v796 = vpop.permute.xlu0 %795
    %799 = vset.pattern.permute.xlu0 0
    %800 = vperm.xlu0 %799, %v698
    %v801 = vpop.permute.xlu0 %800
    %804 = vset.pattern.permute.xlu0 0
    %805 = vperm.xlu0 %804, %v699
    %v806 = vpop.permute.xlu0 %805
    %809 = vset.pattern.permute.xlu0 0
    %810 = vperm.xlu0 %809, %v700
    %v811 = vpop.permute.xlu0 %810
    %814 = vset.pattern.permute.xlu0 0
    %815 = vperm.xlu0 %814, %v701
    %v816 = vpop.permute.xlu0 %815
    %819 = vset.pattern.permute.xlu0 0
    %820 = vperm.xlu0 %819, %v702
    %v821 = vpop.permute.xlu0 %820
    %824 = vset.pattern.permute.xlu0 0
    %825 = vperm.xlu0 %824, %v703
    %v826 = vpop.permute.xlu0 %825
    %829 = vset.pattern.permute.xlu0 0
    %830 = vperm.xlu0 %829, %v704
    %v831 = vpop.permute.xlu0 %830
    %834 = vset.pattern.permute.xlu0 0
    %835 = vperm.xlu0 %834, %v705
    %v836 = vpop.permute.xlu0 %835
    %839 = vset.pattern.permute.xlu0 0
    %840 = vperm.xlu0 %839, %v706
    %v841 = vpop.permute.xlu0 %840
    %844 = vset.pattern.permute.xlu0 0
    %845 = vperm.xlu0 %844, %v707
    %v846 = vpop.permute.xlu0 %845
    %849 = vset.pattern.permute.xlu0 0
    %850 = vperm.xlu0 %849, %v708
    %v851 = vpop.permute.xlu0 %850
    %854 = vset.pattern.permute.xlu0 0
    %855 = vperm.xlu0 %854, %v709
    %v856 = vpop.permute.xlu0 %855
    %859 = vset.pattern.permute.xlu0 0
    %860 = vperm.xlu0 %859, %v710
    %v861 = vpop.permute.xlu0 %860
    %864 = vset.pattern.permute.xlu0 0
    %865 = vperm.xlu0 %864, %v711
    %v866 = vpop.permute.xlu0 %865
    %869 = vset.pattern.permute.xlu0 0
    %870 = vperm.xlu0 %869, %v712
    %v871 = vpop.permute.xlu0 %870
    %874 = vset.pattern.permute.xlu0 0
    %875 = vperm.xlu0 %874, %v713
    %v876 = vpop.permute.xlu0 %875
    %879 = vset.pattern.permute.xlu0 0
    %880 = vperm.xlu0 %879, %v714
    %v881 = vpop.permute.xlu0 %880
    %884 = vset.pattern.permute.xlu0 0
    %885 = vperm.xlu0 %884, %v715
    %v886 = vpop.permute.xlu0 %885
    %889 = vset.pattern.permute.xlu0 0
    %890 = vperm.xlu0 %889, %v716
    %v891 = vpop.permute.xlu0 %890
    %894 = vset.pattern.permute.xlu0 0
    %895 = vperm.xlu0 %894, %v717
    %v896 = vpop.permute.xlu0 %895
    %899 = vset.pattern.permute.xlu0 0
    %900 = vperm.xlu0 %899, %v718
    %v901 = vpop.permute.xlu0 %900
    %904 = vset.pattern.permute.xlu0 0
    %905 = vperm.xlu0 %904, %v719
    %v906 = vpop.permute.xlu0 %905
    %909 = vset.pattern.permute.xlu0 0
    %910 = vperm.xlu0 %909, %v720
    %v911 = vpop.permute.xlu0 %910
    %914 = vset.pattern.permute.xlu0 0
    %915 = vperm.xlu0 %914, %v721
    %v916 = vpop.permute.xlu0 %915
    %919 = vset.pattern.permute.xlu0 0
    %920 = vperm.xlu0 %919, %v722
    %v921 = vpop.permute.xlu0 %920
    %924 = vset.pattern.permute.xlu0 0
    %925 = vperm.xlu0 %924, %v723
    %v926 = vpop.permute.xlu0 %925
    %929 = vset.pattern.permute.xlu0 0
    %930 = vperm.xlu0 %929, %v724
    %v931 = vpop.permute.xlu0 %930
    %934 = vset.pattern.permute.xlu0 0
    %935 = vperm.xlu0 %934, %v725
    %v936 = vpop.permute.xlu0 %935
    %939 = vset.pattern.permute.xlu0 0
    %940 = vperm.xlu0 %939, %v726
    %v941 = vpop.permute.xlu0 %940
    %944 = vset.pattern.permute.xlu0 0
    %945 = vperm.xlu0 %944, %v727
    %v946 = vpop.permute.xlu0 %945
    %949 = vset.pattern.permute.xlu0 0
    %950 = vperm.xlu0 %949, %v728
    %v951 = vpop.permute.xlu0 %950
    %954 = vset.pattern.permute.xlu0 0
    %955 = vperm.xlu0 %954, %v729
    %v956 = vpop.permute.xlu0 %955
    %959 = vset.pattern.permute.xlu0 0
    %960 = vperm.xlu0 %959, %v730
    %v961 = vpop.permute.xlu0 %960
    %964 = vset.pattern.permute.xlu0 0
    %965 = vperm.xlu0 %964, %v731
    %v966 = vpop.permute.xlu0 %965
    %969 = vset.pattern.permute.xlu0 0
    %970 = vperm.xlu0 %969, %v732
    %v971 = vpop.permute.xlu0 %970
    %974 = vset.pattern.permute.xlu0 0
    %975 = vperm.xlu0 %974, %v733
    %v976 = vpop.permute.xlu0 %975
    %979 = vset.pattern.permute.xlu0 0
    %980 = vperm.xlu0 %979, %v734
    %v981 = vpop.permute.xlu0 %980
    %984 = vset.pattern.permute.xlu0 0
    %985 = vperm.xlu0 %984, %v735
    %v986 = vpop.permute.xlu0 %985
    %989 = vset.pattern.permute.xlu0 0
    %990 = vperm.xlu0 %989, %v736
    %v991 = vpop.permute.xlu0 %990
    %994 = vset.pattern.permute.xlu0 0
    %995 = vperm.xlu0 %994, %v737
    %v996 = vpop.permute.xlu0 %995
    %999 = vset.pattern.permute.xlu0 0
    %1000 = vperm.xlu0 %999, %v738
    %v1001 = vpop.permute.xlu0 %1000
    %1004 = vset.pattern.permute.xlu0 0
    %1005 = vperm.xlu0 %1004, %v739
    %v1006 = vpop.permute.xlu0 %1005
    %1009 = vset.pattern.permute.xlu0 0
    %1010 = vperm.xlu0 %1009, %v740
    %v1011 = vpop.permute.xlu0 %1010
    %1014 = vset.pattern.permute.xlu0 0
    %1015 = vperm.xlu0 %1014, %v741
    %v1016 = vpop.permute.xlu0 %1015
    %1019 = vset.pattern.permute.xlu0 0
    %1020 = vperm.xlu0 %1019, %v742
    %v1021 = vpop.permute.xlu0 %1020
    %1024 = vset.pattern.permute.xlu0 0
    %1025 = vperm.xlu0 %1024, %v743
    %v1026 = vpop.permute.xlu0 %1025
    %1029 = vset.pattern.permute.xlu0 0
    %1030 = vperm.xlu0 %1029, %v744
    %v1031 = vpop.permute.xlu0 %1030
    %1034 = vset.pattern.permute.xlu0 0
    %1035 = vperm.xlu0 %1034, %v745
    %v1036 = vpop.permute.xlu0 %1035
    %1039 = vset.pattern.permute.xlu0 0
    %1040 = vperm.xlu0 %1039, %v746
    %v1041 = vpop.permute.xlu0 %1040
    %1044 = vset.pattern.permute.xlu0 0
    %1045 = vperm.xlu0 %1044, %v747
    %v1046 = vpop.permute.xlu0 %1045
    %1049 = vset.pattern.permute.xlu0 0
    %1050 = vperm.xlu0 %1049, %v748
    %v1051 = vpop.permute.xlu0 %1050
    %1054 = vset.pattern.permute.xlu0 0
    %1055 = vperm.xlu0 %1054, %v749
    %v1056 = vpop.permute.xlu0 %1055
    %1059 = vset.pattern.permute.xlu0 0
    %1060 = vperm.xlu0 %1059, %v750
    %v1061 = vpop.permute.xlu0 %1060
    %1064 = vset.pattern.permute.xlu0 0
    %1065 = vperm.xlu0 %1064, %v751
    %v1066 = vpop.permute.xlu0 %1065
    %1069 = vset.pattern.permute.xlu0 0
    %1070 = vperm.xlu0 %1069, %v752
    %v1071 = vpop.permute.xlu0 %1070
    %1074 = vset.pattern.permute.xlu0 0
    %1075 = vperm.xlu0 %1074, %v753
    %v1076 = vpop.permute.xlu0 %1075
    %1079 = vset.pattern.permute.xlu0 0
    %1080 = vperm.xlu0 %1079, %v754
    %v1081 = vpop.permute.xlu0 %1080
    %1084 = vset.pattern.permute.xlu0 0
    %1085 = vperm.xlu0 %1084, %v755
    %v1086 = vpop.permute.xlu0 %1085
    %1089 = vset.pattern.permute.xlu0 0
    %1090 = vperm.xlu0 %1089, %v756
    %v1091 = vpop.permute.xlu0 %1090
    %1094 = vset.pattern.permute.xlu0 0
    %1095 = vperm.xlu0 %1094, %v757
    %v1096 = vpop.permute.xlu0 %1095
    %1099 = vset.pattern.permute.xlu0 0
    %1100 = vperm.xlu0 %1099, %v758
    %v1101 = vpop.permute.xlu0 %1100
    %1104 = vset.pattern.permute.xlu0 0
    %1105 = vperm.xlu0 %1104, %v759
    %v1106 = vpop.permute.xlu0 %1105
    %1109 = vset.pattern.permute.xlu0 0
    %1110 = vperm.xlu0 %1109, %v760
    %v1111 = vpop.permute.xlu0 %1110
    %1114 = vset.pattern.permute.xlu0 0
    %1115 = vperm.xlu0 %1114, %v761
    %v1116 = vpop.permute.xlu0 %1115
    %1119 = vset.pattern.permute.xlu0 0
    %1120 = vperm.xlu0 %1119, %v762
    %v1121 = vpop.permute.xlu0 %1120
    %1124 = vset.pattern.permute.xlu0 0
    %1125 = vperm.xlu0 %1124, %v763
    %v1126 = vpop.permute.xlu0 %1125
    %1129 = vset.pattern.permute.xlu0 0
    %1130 = vperm.xlu0 %1129, %v764
    %v1131 = vpop.permute.xlu0 %1130
    %1134 = vset.pattern.permute.xlu0 0
    %1135 = vperm.xlu0 %1134, %v765
    %v1136 = vpop.permute.xlu0 %1135
    %1139 = vset.pattern.permute.xlu0 0
    %1140 = vperm.xlu0 %1139, %v766
    %v1141 = vpop.permute.xlu0 %1140
    %1144 = vset.pattern.permute.xlu0 0
    %1145 = vperm.xlu0 %1144, %v767
    %v1146 = vpop.permute.xlu0 %1145
    %1149 = vset.pattern.permute.xlu0 0
    %1150 = vperm.xlu0 %1149, %v768
    %v1151 = vpop.permute.xlu0 %1150
    %1154 = vset.pattern.permute.xlu0 0
    %1155 = vperm.xlu0 %1154, %v769
    %v1156 = vpop.permute.xlu0 %1155
    %1159 = vset.pattern.permute.xlu0 0
    %1160 = vperm.xlu0 %1159, %v770
    %v1161 = vpop.permute.xlu0 %1160
    %1164 = vset.pattern.permute.xlu0 0
    %1165 = vperm.xlu0 %1164, %v771
    %v1166 = vpop.permute.xlu0 %1165
    %1169 = vset.pattern.permute.xlu0 0
    %1170 = vperm.xlu0 %1169, %v772
    %v1171 = vpop.permute.xlu0 %1170
    %v1173 = vadd.f32 %v531, %v776
    %v1174 = vadd.f32 %v532, %v781
    %v1175 = vadd.f32 %v533, %v786
    %v1176 = vadd.f32 %v534, %v791
    %v1177 = vadd.f32 %v535, %v796
    %v1178 = vadd.f32 %v531, %v801
    %v1179 = vadd.f32 %v532, %v806
    %v1180 = vadd.f32 %v533, %v811
    %v1181 = vadd.f32 %v534, %v816
    %v1182 = vadd.f32 %v535, %v821
    %v1183 = vadd.f32 %v531, %v826
    %v1184 = vadd.f32 %v532, %v831
    %v1185 = vadd.f32 %v533, %v836
    %v1186 = vadd.f32 %v534, %v841
    %v1187 = vadd.f32 %v535, %v846
    %v1188 = vadd.f32 %v531, %v851
    %v1189 = vadd.f32 %v532, %v856
    %v1190 = vadd.f32 %v533, %v861
    %v1191 = vadd.f32 %v534, %v866
    %v1192 = vadd.f32 %v535, %v871
    %v1193 = vadd.f32 %v531, %v876
    %v1194 = vadd.f32 %v532, %v881
    %v1195 = vadd.f32 %v533, %v886
    %v1196 = vadd.f32 %v534, %v891
    %v1197 = vadd.f32 %v535, %v896
    %v1198 = vadd.f32 %v531, %v901
    %v1199 = vadd.f32 %v532, %v906
    %v1200 = vadd.f32 %v533, %v911
    %v1201 = vadd.f32 %v534, %v916
    %v1202 = vadd.f32 %v535, %v921
    %v1203 = vadd.f32 %v531, %v926
    %v1204 = vadd.f32 %v532, %v931
    %v1205 = vadd.f32 %v533, %v936
    %v1206 = vadd.f32 %v534, %v941
    %v1207 = vadd.f32 %v535, %v946
    %v1208 = vadd.f32 %v531, %v951
    %v1209 = vadd.f32 %v532, %v956
    %v1210 = vadd.f32 %v533, %v961
    %v1211 = vadd.f32 %v534, %v966
    %v1212 = vadd.f32 %v535, %v971
    %v1213 = vadd.f32 %v531, %v976
    %v1214 = vadd.f32 %v532, %v981
    %v1215 = vadd.f32 %v533, %v986
    %v1216 = vadd.f32 %v534, %v991
    %v1217 = vadd.f32 %v535, %v996
    %v1218 = vadd.f32 %v531, %v1001
    %v1219 = vadd.f32 %v532, %v1006
    %v1220 = vadd.f32 %v533, %v1011
    %v1221 = vadd.f32 %v534, %v1016
    %v1222 = vadd.f32 %v535, %v1021
    %v1223 = vadd.f32 %v531, %v1026
    %v1224 = vadd.f32 %v532, %v1031
    %v1225 = vadd.f32 %v533, %v1036
    %v1226 = vadd.f32 %v534, %v1041
    %v1227 = vadd.f32 %v535, %v1046
    %v1228 = vadd.f32 %v531, %v1051
    %v1229 = vadd.f32 %v532, %v1056
    %v1230 = vadd.f32 %v533, %v1061
    %v1231 = vadd.f32 %v534, %v1066
    %v1232 = vadd.f32 %v535, %v1071
    %v1233 = vadd.f32 %v531, %v1076
    %v1234 = vadd.f32 %v532, %v1081
    %v1235 = vadd.f32 %v533, %v1086
    %v1236 = vadd.f32 %v534, %v1091
    %v1237 = vadd.f32 %v535, %v1096
    %v1238 = vadd.f32 %v531, %v1101
    %v1239 = vadd.f32 %v532, %v1106
    %v1240 = vadd.f32 %v533, %v1111
    %v1241 = vadd.f32 %v534, %v1116
    %v1242 = vadd.f32 %v535, %v1121
    %v1243 = vadd.f32 %v531, %v1126
    %v1244 = vadd.f32 %v532, %v1131
    %v1245 = vadd.f32 %v533, %v1136
    %v1246 = vadd.f32 %v534, %v1141
    %v1247 = vadd.f32 %v535, %v1146
    %v1248 = vadd.f32 %v531, %v1151
    %v1249 = vadd.f32 %v532, %v1156
    %v1250 = vadd.f32 %v533, %v1161
    %v1251 = vadd.f32 %v534, %v1166
    %v1252 = vadd.f32 %v535, %v1171
    %v1253 = vsel %vm574, %v1173, inf
    %v1254 = vsel %vm574, %v1174, inf
    %v1255 = vmin.f32 %v1253, %v1254
    %v1256 = vsel %vm574, %v1175, inf
    %v1257 = vmin.f32 %v1255, %v1256
    %v1258 = vsel %vm574, %v1176, inf
    %v1259 = vmin.f32 %v1257, %v1258
    %v1260 = vsel %vm574, %v1177, inf
    %v1261 = vmin.f32 %v1259, %v1260
    %v1262 = vrot.slane %v1261, 4
    %v1263 = vmin.f32 %v1261, %v1262
    %v1264 = vrot.slane %v1263, 2
    %v1265 = vmin.f32 %v1263, %v1264
    %v1266 = vrot.slane %v1265, 1
    %v1267 = vmin.f32 %v1265, %v1266
    %v1268 = vsel %vm574, %v1178, inf
    %v1269 = vsel %vm574, %v1179, inf
    %v1270 = vmin.f32 %v1268, %v1269
    %v1271 = vsel %vm574, %v1180, inf
    %v1272 = vmin.f32 %v1270, %v1271
    %v1273 = vsel %vm574, %v1181, inf
    %v1274 = vmin.f32 %v1272, %v1273
    %v1275 = vsel %vm574, %v1182, inf
    %v1276 = vmin.f32 %v1274, %v1275
    %v1277 = vrot.slane %v1276, 4
    %v1278 = vmin.f32 %v1276, %v1277
    %v1279 = vrot.slane %v1278, 2
    %v1280 = vmin.f32 %v1278, %v1279
    %v1281 = vrot.slane %v1280, 1
    %v1282 = vmin.f32 %v1280, %v1281
    %v1283 = vsel %vm574, %v1183, inf
    %v1284 = vsel %vm574, %v1184, inf
    %v1285 = vmin.f32 %v1283, %v1284
    %v1286 = vsel %vm574, %v1185, inf
    %v1287 = vmin.f32 %v1285, %v1286
    %v1288 = vsel %vm574, %v1186, inf
    %v1289 = vmin.f32 %v1287, %v1288
    %v1290 = vsel %vm574, %v1187, inf
    %v1291 = vmin.f32 %v1289, %v1290
    %v1292 = vrot.slane %v1291, 4
    %v1293 = vmin.f32 %v1291, %v1292
    %v1294 = vrot.slane %v1293, 2
    %v1295 = vmin.f32 %v1293, %v1294
    %v1296 = vrot.slane %v1295, 1
    %v1297 = vmin.f32 %v1295, %v1296
    %v1298 = vsel %vm574, %v1188, inf
    %v1299 = vsel %vm574, %v1189, inf
    %v1300 = vmin.f32 %v1298, %v1299
    %v1301 = vsel %vm574, %v1190, inf
    %v1302 = vmin.f32 %v1300, %v1301
    %v1303 = vsel %vm574, %v1191, inf
    %v1304 = vmin.f32 %v1302, %v1303
    %v1305 = vsel %vm574, %v1192, inf
    %v1306 = vmin.f32 %v1304, %v1305
    %v1307 = vrot.slane %v1306, 4
    %v1308 = vmin.f32 %v1306, %v1307
    %v1309 = vrot.slane %v1308, 2
    %v1310 = vmin.f32 %v1308, %v1309
    %v1311 = vrot.slane %v1310, 1
    %v1312 = vmin.f32 %v1310, %v1311
    %v1313 = vsel %vm574, %v1193, inf
    %v1314 = vsel %vm574, %v1194, inf
    %v1315 = vmin.f32 %v1313, %v1314
    %v1316 = vsel %vm574, %v1195, inf
    %v1317 = vmin.f32 %v1315, %v1316
    %v1318 = vsel %vm574, %v1196, inf
    %v1319 = vmin.f32 %v1317, %v1318
    %v1320 = vsel %vm574, %v1197, inf
    %v1321 = vmin.f32 %v1319, %v1320
    %v1322 = vrot.slane %v1321, 4
    %v1323 = vmin.f32 %v1321, %v1322
    %v1324 = vrot.slane %v1323, 2
    %v1325 = vmin.f32 %v1323, %v1324
    %v1326 = vrot.slane %v1325, 1
    %v1327 = vmin.f32 %v1325, %v1326
    %v1328 = vsel %vm574, %v1198, inf
    %v1329 = vsel %vm574, %v1199, inf
    %v1330 = vmin.f32 %v1328, %v1329
    %v1331 = vsel %vm574, %v1200, inf
    %v1332 = vmin.f32 %v1330, %v1331
    %v1333 = vsel %vm574, %v1201, inf
    %v1334 = vmin.f32 %v1332, %v1333
    %v1335 = vsel %vm574, %v1202, inf
    %v1336 = vmin.f32 %v1334, %v1335
    %v1337 = vrot.slane %v1336, 4
    %v1338 = vmin.f32 %v1336, %v1337
    %v1339 = vrot.slane %v1338, 2
    %v1340 = vmin.f32 %v1338, %v1339
    %v1341 = vrot.slane %v1340, 1
    %v1342 = vmin.f32 %v1340, %v1341
    %v1343 = vsel %vm574, %v1203, inf
    %v1344 = vsel %vm574, %v1204, inf
    %v1345 = vmin.f32 %v1343, %v1344
    %v1346 = vsel %vm574, %v1205, inf
    %v1347 = vmin.f32 %v1345, %v1346
    %v1348 = vsel %vm574, %v1206, inf
    %v1349 = vmin.f32 %v1347, %v1348
    %v1350 = vsel %vm574, %v1207, inf
    %v1351 = vmin.f32 %v1349, %v1350
    %v1352 = vrot.slane %v1351, 4
    %v1353 = vmin.f32 %v1351, %v1352
    %v1354 = vrot.slane %v1353, 2
    %v1355 = vmin.f32 %v1353, %v1354
    %v1356 = vrot.slane %v1355, 1
    %v1357 = vmin.f32 %v1355, %v1356
    %v1358 = vsel %vm574, %v1208, inf
    %v1359 = vsel %vm574, %v1209, inf
    %v1360 = vmin.f32 %v1358, %v1359
    %v1361 = vsel %vm574, %v1210, inf
    %v1362 = vmin.f32 %v1360, %v1361
    %v1363 = vsel %vm574, %v1211, inf
    %v1364 = vmin.f32 %v1362, %v1363
    %v1365 = vsel %vm574, %v1212, inf
    %v1366 = vmin.f32 %v1364, %v1365
    %v1367 = vrot.slane %v1366, 4
    %v1368 = vmin.f32 %v1366, %v1367
    %v1369 = vrot.slane %v1368, 2
    %v1370 = vmin.f32 %v1368, %v1369
    %v1371 = vrot.slane %v1370, 1
    %v1372 = vmin.f32 %v1370, %v1371
    %v1373 = vsel %vm574, %v1213, inf
    %v1374 = vsel %vm574, %v1214, inf
    %v1375 = vmin.f32 %v1373, %v1374
    %v1376 = vsel %vm574, %v1215, inf
    %v1377 = vmin.f32 %v1375, %v1376
    %v1378 = vsel %vm574, %v1216, inf
    %v1379 = vmin.f32 %v1377, %v1378
    %v1380 = vsel %vm574, %v1217, inf
    %v1381 = vmin.f32 %v1379, %v1380
    %v1382 = vrot.slane %v1381, 4
    %v1383 = vmin.f32 %v1381, %v1382
    %v1384 = vrot.slane %v1383, 2
    %v1385 = vmin.f32 %v1383, %v1384
    %v1386 = vrot.slane %v1385, 1
    %v1387 = vmin.f32 %v1385, %v1386
    %v1388 = vsel %vm574, %v1218, inf
    %v1389 = vsel %vm574, %v1219, inf
    %v1390 = vmin.f32 %v1388, %v1389
    %v1391 = vsel %vm574, %v1220, inf
    %v1392 = vmin.f32 %v1390, %v1391
    %v1393 = vsel %vm574, %v1221, inf
    %v1394 = vmin.f32 %v1392, %v1393
    %v1395 = vsel %vm574, %v1222, inf
    %v1396 = vmin.f32 %v1394, %v1395
    %v1397 = vrot.slane %v1396, 4
    %v1398 = vmin.f32 %v1396, %v1397
    %v1399 = vrot.slane %v1398, 2
    %v1400 = vmin.f32 %v1398, %v1399
    %v1401 = vrot.slane %v1400, 1
    %v1402 = vmin.f32 %v1400, %v1401
    %v1403 = vsel %vm574, %v1223, inf
    %v1404 = vsel %vm574, %v1224, inf
    %v1405 = vmin.f32 %v1403, %v1404
    %v1406 = vsel %vm574, %v1225, inf
    %v1407 = vmin.f32 %v1405, %v1406
    %v1408 = vsel %vm574, %v1226, inf
    %v1409 = vmin.f32 %v1407, %v1408
    %v1410 = vsel %vm574, %v1227, inf
    %v1411 = vmin.f32 %v1409, %v1410
    %v1412 = vrot.slane %v1411, 4
    %v1413 = vmin.f32 %v1411, %v1412
    %v1414 = vrot.slane %v1413, 2
    %v1415 = vmin.f32 %v1413, %v1414
    %v1416 = vrot.slane %v1415, 1
    %v1417 = vmin.f32 %v1415, %v1416
    %v1418 = vsel %vm574, %v1228, inf
    %v1419 = vsel %vm574, %v1229, inf
    %v1420 = vmin.f32 %v1418, %v1419
    %v1421 = vsel %vm574, %v1230, inf
    %v1422 = vmin.f32 %v1420, %v1421
    %v1423 = vsel %vm574, %v1231, inf
    %v1424 = vmin.f32 %v1422, %v1423
    %v1425 = vsel %vm574, %v1232, inf
    %v1426 = vmin.f32 %v1424, %v1425
    %v1427 = vrot.slane %v1426, 4
    %v1428 = vmin.f32 %v1426, %v1427
    %v1429 = vrot.slane %v1428, 2
    %v1430 = vmin.f32 %v1428, %v1429
    %v1431 = vrot.slane %v1430, 1
    %v1432 = vmin.f32 %v1430, %v1431
    %v1433 = vsel %vm574, %v1233, inf
    %v1434 = vsel %vm574, %v1234, inf
    %v1435 = vmin.f32 %v1433, %v1434
    %v1436 = vsel %vm574, %v1235, inf
    %v1437 = vmin.f32 %v1435, %v1436
    %v1438 = vsel %vm574, %v1236, inf
    %v1439 = vmin.f32 %v1437, %v1438
    %v1440 = vsel %vm574, %v1237, inf
    %v1441 = vmin.f32 %v1439, %v1440
    %v1442 = vrot.slane %v1441, 4
    %v1443 = vmin.f32 %v1441, %v1442
    %v1444 = vrot.slane %v1443, 2
    %v1445 = vmin.f32 %v1443, %v1444
    %v1446 = vrot.slane %v1445, 1
    %v1447 = vmin.f32 %v1445, %v1446
    %v1448 = vsel %vm574, %v1238, inf
    %v1449 = vsel %vm574, %v1239, inf
    %v1450 = vmin.f32 %v1448, %v1449
    %v1451 = vsel %vm574, %v1240, inf
    %v1452 = vmin.f32 %v1450, %v1451
    %v1453 = vsel %vm574, %v1241, inf
    %v1454 = vmin.f32 %v1452, %v1453
    %v1455 = vsel %vm574, %v1242, inf
    %v1456 = vmin.f32 %v1454, %v1455
    %v1457 = vrot.slane %v1456, 4
    %v1458 = vmin.f32 %v1456, %v1457
    %v1459 = vrot.slane %v1458, 2
    %v1460 = vmin.f32 %v1458, %v1459
    %v1461 = vrot.slane %v1460, 1
    %v1462 = vmin.f32 %v1460, %v1461
    %v1463 = vsel %vm574, %v1243, inf
    %v1464 = vsel %vm574, %v1244, inf
    %v1465 = vmin.f32 %v1463, %v1464
    %v1466 = vsel %vm574, %v1245, inf
    %v1467 = vmin.f32 %v1465, %v1466
    %v1468 = vsel %vm574, %v1246, inf
    %v1469 = vmin.f32 %v1467, %v1468
    %v1470 = vsel %vm574, %v1247, inf
    %v1471 = vmin.f32 %v1469, %v1470
    %v1472 = vrot.slane %v1471, 4
    %v1473 = vmin.f32 %v1471, %v1472
    %v1474 = vrot.slane %v1473, 2
    %v1475 = vmin.f32 %v1473, %v1474
    %v1476 = vrot.slane %v1475, 1
    %v1477 = vmin.f32 %v1475, %v1476
    %v1478 = vsel %vm574, %v1248, inf
    %v1479 = vsel %vm574, %v1249, inf
    %v1480 = vmin.f32 %v1478, %v1479
    %v1481 = vsel %vm574, %v1250, inf
    %v1482 = vmin.f32 %v1480, %v1481
    %v1483 = vsel %vm574, %v1251, inf
    %v1484 = vmin.f32 %v1482, %v1483
    %v1485 = vsel %vm574, %v1252, inf
    %v1486 = vmin.f32 %v1484, %v1485
    %v1487 = vrot.slane %v1486, 4
    %v1488 = vmin.f32 %v1486, %v1487
    %v1489 = vrot.slane %v1488, 2
    %v1490 = vmin.f32 %v1488, %v1489
    %v1491 = vrot.slane %v1490, 1
    %v1492 = vmin.f32 %v1490, %v1491
    %v1493 = vsub.f32 %v531, %v776
    %v1494 = vsub.f32 %v532, %v781
    %v1495 = vsub.f32 %v533, %v786
    %v1496 = vsub.f32 %v534, %v791
    %v1497 = vsub.f32 %v535, %v796
    %v1498 = vsub.f32 %v531, %v801
    %v1499 = vsub.f32 %v532, %v806
    %v1500 = vsub.f32 %v533, %v811
    %v1501 = vsub.f32 %v534, %v816
    %v1502 = vsub.f32 %v535, %v821
    %v1503 = vsub.f32 %v531, %v826
    %v1504 = vsub.f32 %v532, %v831
    %v1505 = vsub.f32 %v533, %v836
    %v1506 = vsub.f32 %v534, %v841
    %v1507 = vsub.f32 %v535, %v846
    %v1508 = vsub.f32 %v531, %v851
    %v1509 = vsub.f32 %v532, %v856
    %v1510 = vsub.f32 %v533, %v861
    %v1511 = vsub.f32 %v534, %v866
    %v1512 = vsub.f32 %v535, %v871
    %v1513 = vsub.f32 %v531, %v876
    %v1514 = vsub.f32 %v532, %v881
    %v1515 = vsub.f32 %v533, %v886
    %v1516 = vsub.f32 %v534, %v891
    %v1517 = vsub.f32 %v535, %v896
    %v1518 = vsub.f32 %v531, %v901
    %v1519 = vsub.f32 %v532, %v906
    %v1520 = vsub.f32 %v533, %v911
    %v1521 = vsub.f32 %v534, %v916
    %v1522 = vsub.f32 %v535, %v921
    %v1523 = vsub.f32 %v531, %v926
    %v1524 = vsub.f32 %v532, %v931
    %v1525 = vsub.f32 %v533, %v936
    %v1526 = vsub.f32 %v534, %v941
    %v1527 = vsub.f32 %v535, %v946
    %v1528 = vsub.f32 %v531, %v951
    %v1529 = vsub.f32 %v532, %v956
    %v1530 = vsub.f32 %v533, %v961
    %v1531 = vsub.f32 %v534, %v966
    %v1532 = vsub.f32 %v535, %v971
    %v1533 = vsub.f32 %v531, %v976
    %v1534 = vsub.f32 %v532, %v981
    %v1535 = vsub.f32 %v533, %v986
    %v1536 = vsub.f32 %v534, %v991
    %v1537 = vsub.f32 %v535, %v996
    %v1538 = vsub.f32 %v531, %v1001
    %v1539 = vsub.f32 %v532, %v1006
    %v1540 = vsub.f32 %v533, %v1011
    %v1541 = vsub.f32 %v534, %v1016
    %v1542 = vsub.f32 %v535, %v1021
    %v1543 = vsub.f32 %v531, %v1026
    %v1544 = vsub.f32 %v532, %v1031
    %v1545 = vsub.f32 %v533, %v1036
    %v1546 = vsub.f32 %v534, %v1041
    %v1547 = vsub.f32 %v535, %v1046
    %v1548 = vsub.f32 %v531, %v1051
    %v1549 = vsub.f32 %v532, %v1056
    %v1550 = vsub.f32 %v533, %v1061
    %v1551 = vsub.f32 %v534, %v1066
    %v1552 = vsub.f32 %v535, %v1071
    %v1553 = vsub.f32 %v531, %v1076
    %v1554 = vsub.f32 %v532, %v1081
    %v1555 = vsub.f32 %v533, %v1086
    %v1556 = vsub.f32 %v534, %v1091
    %v1557 = vsub.f32 %v535, %v1096
    %v1558 = vsub.f32 %v531, %v1101
    %v1559 = vsub.f32 %v532, %v1106
    %v1560 = vsub.f32 %v533, %v1111
    %v1561 = vsub.f32 %v534, %v1116
    %v1562 = vsub.f32 %v535, %v1121
    %v1563 = vsub.f32 %v531, %v1126
    %v1564 = vsub.f32 %v532, %v1131
    %v1565 = vsub.f32 %v533, %v1136
    %v1566 = vsub.f32 %v534, %v1141
    %v1567 = vsub.f32 %v535, %v1146
    %v1568 = vsub.f32 %v531, %v1151
    %v1569 = vsub.f32 %v532, %v1156
    %v1570 = vsub.f32 %v533, %v1161
    %v1571 = vsub.f32 %v534, %v1166
    %v1572 = vsub.f32 %v535, %v1171
    %v1573 = vsel %vm574, %v1493, -inf
    %v1574 = vsel %vm574, %v1494, -inf
    %v1575 = vmax.f32 %v1573, %v1574
    %v1576 = vsel %vm574, %v1495, -inf
    %v1577 = vmax.f32 %v1575, %v1576
    %v1578 = vsel %vm574, %v1496, -inf
    %v1579 = vmax.f32 %v1577, %v1578
    %v1580 = vsel %vm574, %v1497, -inf
    %v1581 = vmax.f32 %v1579, %v1580
    %v1582 = vrot.slane %v1581, 4
    %v1583 = vmax.f32 %v1581, %v1582
    %v1584 = vrot.slane %v1583, 2
    %v1585 = vmax.f32 %v1583, %v1584
    %v1586 = vrot.slane %v1585, 1
    %v1587 = vmax.f32 %v1585, %v1586
    %v1588 = vsel %vm574, %v1498, -inf
    %v1589 = vsel %vm574, %v1499, -inf
    %v1590 = vmax.f32 %v1588, %v1589
    %v1591 = vsel %vm574, %v1500, -inf
    %v1592 = vmax.f32 %v1590, %v1591
    %v1593 = vsel %vm574, %v1501, -inf
    %v1594 = vmax.f32 %v1592, %v1593
    %v1595 = vsel %vm574, %v1502, -inf
    %v1596 = vmax.f32 %v1594, %v1595
    %v1597 = vrot.slane %v1596, 4
    %v1598 = vmax.f32 %v1596, %v1597
    %v1599 = vrot.slane %v1598, 2
    %v1600 = vmax.f32 %v1598, %v1599
    %v1601 = vrot.slane %v1600, 1
    %v1602 = vmax.f32 %v1600, %v1601
    %v1603 = vsel %vm574, %v1503, -inf
    %v1604 = vsel %vm574, %v1504, -inf
    %v1605 = vmax.f32 %v1603, %v1604
    %v1606 = vsel %vm574, %v1505, -inf
    %v1607 = vmax.f32 %v1605, %v1606
    %v1608 = vsel %vm574, %v1506, -inf
    %v1609 = vmax.f32 %v1607, %v1608
    %v1610 = vsel %vm574, %v1507, -inf
    %v1611 = vmax.f32 %v1609, %v1610
    %v1612 = vrot.slane %v1611, 4
    %v1613 = vmax.f32 %v1611, %v1612
    %v1614 = vrot.slane %v1613, 2
    %v1615 = vmax.f32 %v1613, %v1614
    %v1616 = vrot.slane %v1615, 1
    %v1617 = vmax.f32 %v1615, %v1616
    %v1618 = vsel %vm574, %v1508, -inf
    %v1619 = vsel %vm574, %v1509, -inf
    %v1620 = vmax.f32 %v1618, %v1619
    %v1621 = vsel %vm574, %v1510, -inf
    %v1622 = vmax.f32 %v1620, %v1621
    %v1623 = vsel %vm574, %v1511, -inf
    %v1624 = vmax.f32 %v1622, %v1623
    %v1625 = vsel %vm574, %v1512, -inf
    %v1626 = vmax.f32 %v1624, %v1625
    %v1627 = vrot.slane %v1626, 4
    %v1628 = vmax.f32 %v1626, %v1627
    %v1629 = vrot.slane %v1628, 2
    %v1630 = vmax.f32 %v1628, %v1629
    %v1631 = vrot.slane %v1630, 1
    %v1632 = vmax.f32 %v1630, %v1631
    %v1633 = vsel %vm574, %v1513, -inf
    %v1634 = vsel %vm574, %v1514, -inf
    %v1635 = vmax.f32 %v1633, %v1634
    %v1636 = vsel %vm574, %v1515, -inf
    %v1637 = vmax.f32 %v1635, %v1636
    %v1638 = vsel %vm574, %v1516, -inf
    %v1639 = vmax.f32 %v1637, %v1638
    %v1640 = vsel %vm574, %v1517, -inf
    %v1641 = vmax.f32 %v1639, %v1640
    %v1642 = vrot.slane %v1641, 4
    %v1643 = vmax.f32 %v1641, %v1642
    %v1644 = vrot.slane %v1643, 2
    %v1645 = vmax.f32 %v1643, %v1644
    %v1646 = vrot.slane %v1645, 1
    %v1647 = vmax.f32 %v1645, %v1646
    %v1648 = vsel %vm574, %v1518, -inf
    %v1649 = vsel %vm574, %v1519, -inf
    %v1650 = vmax.f32 %v1648, %v1649
    %v1651 = vsel %vm574, %v1520, -inf
    %v1652 = vmax.f32 %v1650, %v1651
    %v1653 = vsel %vm574, %v1521, -inf
    %v1654 = vmax.f32 %v1652, %v1653
    %v1655 = vsel %vm574, %v1522, -inf
    %v1656 = vmax.f32 %v1654, %v1655
    %v1657 = vrot.slane %v1656, 4
    %v1658 = vmax.f32 %v1656, %v1657
    %v1659 = vrot.slane %v1658, 2
    %v1660 = vmax.f32 %v1658, %v1659
    %v1661 = vrot.slane %v1660, 1
    %v1662 = vmax.f32 %v1660, %v1661
    %v1663 = vsel %vm574, %v1523, -inf
    %v1664 = vsel %vm574, %v1524, -inf
    %v1665 = vmax.f32 %v1663, %v1664
    %v1666 = vsel %vm574, %v1525, -inf
    %v1667 = vmax.f32 %v1665, %v1666
    %v1668 = vsel %vm574, %v1526, -inf
    %v1669 = vmax.f32 %v1667, %v1668
    %v1670 = vsel %vm574, %v1527, -inf
    %v1671 = vmax.f32 %v1669, %v1670
    %v1672 = vrot.slane %v1671, 4
    %v1673 = vmax.f32 %v1671, %v1672
    %v1674 = vrot.slane %v1673, 2
    %v1675 = vmax.f32 %v1673, %v1674
    %v1676 = vrot.slane %v1675, 1
    %v1677 = vmax.f32 %v1675, %v1676
    %v1678 = vsel %vm574, %v1528, -inf
    %v1679 = vsel %vm574, %v1529, -inf
    %v1680 = vmax.f32 %v1678, %v1679
    %v1681 = vsel %vm574, %v1530, -inf
    %v1682 = vmax.f32 %v1680, %v1681
    %v1683 = vsel %vm574, %v1531, -inf
    %v1684 = vmax.f32 %v1682, %v1683
    %v1685 = vsel %vm574, %v1532, -inf
    %v1686 = vmax.f32 %v1684, %v1685
    %v1687 = vrot.slane %v1686, 4
    %v1688 = vmax.f32 %v1686, %v1687
    %v1689 = vrot.slane %v1688, 2
    %v1690 = vmax.f32 %v1688, %v1689
    %v1691 = vrot.slane %v1690, 1
    %v1692 = vmax.f32 %v1690, %v1691
    %v1693 = vsel %vm574, %v1533, -inf
    %v1694 = vsel %vm574, %v1534, -inf
    %v1695 = vmax.f32 %v1693, %v1694
    %v1696 = vsel %vm574, %v1535, -inf
    %v1697 = vmax.f32 %v1695, %v1696
    %v1698 = vsel %vm574, %v1536, -inf
    %v1699 = vmax.f32 %v1697, %v1698
    %v1700 = vsel %vm574, %v1537, -inf
    %v1701 = vmax.f32 %v1699, %v1700
    %v1702 = vrot.slane %v1701, 4
    %v1703 = vmax.f32 %v1701, %v1702
    %v1704 = vrot.slane %v1703, 2
    %v1705 = vmax.f32 %v1703, %v1704
    %v1706 = vrot.slane %v1705, 1
    %v1707 = vmax.f32 %v1705, %v1706
    %v1708 = vsel %vm574, %v1538, -inf
    %v1709 = vsel %vm574, %v1539, -inf
    %v1710 = vmax.f32 %v1708, %v1709
    %v1711 = vsel %vm574, %v1540, -inf
    %v1712 = vmax.f32 %v1710, %v1711
    %v1713 = vsel %vm574, %v1541, -inf
    %v1714 = vmax.f32 %v1712, %v1713
    %v1715 = vsel %vm574, %v1542, -inf
    %v1716 = vmax.f32 %v1714, %v1715
    %v1717 = vrot.slane %v1716, 4
    %v1718 = vmax.f32 %v1716, %v1717
    %v1719 = vrot.slane %v1718, 2
    %v1720 = vmax.f32 %v1718, %v1719
    %v1721 = vrot.slane %v1720, 1
    %v1722 = vmax.f32 %v1720, %v1721
    %v1723 = vsel %vm574, %v1543, -inf
    %v1724 = vsel %vm574, %v1544, -inf
    %v1725 = vmax.f32 %v1723, %v1724
    %v1726 = vsel %vm574, %v1545, -inf
    %v1727 = vmax.f32 %v1725, %v1726
    %v1728 = vsel %vm574, %v1546, -inf
    %v1729 = vmax.f32 %v1727, %v1728
    %v1730 = vsel %vm574, %v1547, -inf
    %v1731 = vmax.f32 %v1729, %v1730
    %v1732 = vrot.slane %v1731, 4
    %v1733 = vmax.f32 %v1731, %v1732
    %v1734 = vrot.slane %v1733, 2
    %v1735 = vmax.f32 %v1733, %v1734
    %v1736 = vrot.slane %v1735, 1
    %v1737 = vmax.f32 %v1735, %v1736
    %v1738 = vsel %vm574, %v1548, -inf
    %v1739 = vsel %vm574, %v1549, -inf
    %v1740 = vmax.f32 %v1738, %v1739
    %v1741 = vsel %vm574, %v1550, -inf
    %v1742 = vmax.f32 %v1740, %v1741
    %v1743 = vsel %vm574, %v1551, -inf
    %v1744 = vmax.f32 %v1742, %v1743
    %v1745 = vsel %vm574, %v1552, -inf
    %v1746 = vmax.f32 %v1744, %v1745
    %v1747 = vrot.slane %v1746, 4
    %v1748 = vmax.f32 %v1746, %v1747
    %v1749 = vrot.slane %v1748, 2
    %v1750 = vmax.f32 %v1748, %v1749
    %v1751 = vrot.slane %v1750, 1
    %v1752 = vmax.f32 %v1750, %v1751
    %v1753 = vsel %vm574, %v1553, -inf
    %v1754 = vsel %vm574, %v1554, -inf
    %v1755 = vmax.f32 %v1753, %v1754
    %v1756 = vsel %vm574, %v1555, -inf
    %v1757 = vmax.f32 %v1755, %v1756
    %v1758 = vsel %vm574, %v1556, -inf
    %v1759 = vmax.f32 %v1757, %v1758
    %v1760 = vsel %vm574, %v1557, -inf
    %v1761 = vmax.f32 %v1759, %v1760
    %v1762 = vrot.slane %v1761, 4
    %v1763 = vmax.f32 %v1761, %v1762
    %v1764 = vrot.slane %v1763, 2
    %v1765 = vmax.f32 %v1763, %v1764
    %v1766 = vrot.slane %v1765, 1
    %v1767 = vmax.f32 %v1765, %v1766
    %v1768 = vsel %vm574, %v1558, -inf
    %v1769 = vsel %vm574, %v1559, -inf
    %v1770 = vmax.f32 %v1768, %v1769
    %v1771 = vsel %vm574, %v1560, -inf
    %v1772 = vmax.f32 %v1770, %v1771
    %v1773 = vsel %vm574, %v1561, -inf
    %v1774 = vmax.f32 %v1772, %v1773
    %v1775 = vsel %vm574, %v1562, -inf
    %v1776 = vmax.f32 %v1774, %v1775
    %v1777 = vrot.slane %v1776, 4
    %v1778 = vmax.f32 %v1776, %v1777
    %v1779 = vrot.slane %v1778, 2
    %v1780 = vmax.f32 %v1778, %v1779
    %v1781 = vrot.slane %v1780, 1
    %v1782 = vmax.f32 %v1780, %v1781
    %v1783 = vsel %vm574, %v1563, -inf
    %v1784 = vsel %vm574, %v1564, -inf
    %v1785 = vmax.f32 %v1783, %v1784
    %v1786 = vsel %vm574, %v1565, -inf
    %v1787 = vmax.f32 %v1785, %v1786
    %v1788 = vsel %vm574, %v1566, -inf
    %v1789 = vmax.f32 %v1787, %v1788
    %v1790 = vsel %vm574, %v1567, -inf
    %v1791 = vmax.f32 %v1789, %v1790
    %v1792 = vrot.slane %v1791, 4
    %v1793 = vmax.f32 %v1791, %v1792
    %v1794 = vrot.slane %v1793, 2
    %v1795 = vmax.f32 %v1793, %v1794
    %v1796 = vrot.slane %v1795, 1
    %v1797 = vmax.f32 %v1795, %v1796
    %v1798 = vsel %vm574, %v1568, -inf
    %v1799 = vsel %vm574, %v1569, -inf
    %v1800 = vmax.f32 %v1798, %v1799
    %v1801 = vsel %vm574, %v1570, -inf
    %v1802 = vmax.f32 %v1800, %v1801
    %v1803 = vsel %vm574, %v1571, -inf
    %v1804 = vmax.f32 %v1802, %v1803
    %v1805 = vsel %vm574, %v1572, -inf
    %v1806 = vmax.f32 %v1804, %v1805
    %v1807 = vrot.slane %v1806, 4
    %v1808 = vmax.f32 %v1806, %v1807
    %v1809 = vrot.slane %v1808, 2
    %v1810 = vmax.f32 %v1808, %v1809
    %v1811 = vrot.slane %v1810, 1
    %v1812 = vmax.f32 %v1810, %v1811
    %vm1813 = vcmp.gt.f32.partialorder %v539, 0.0
    %vm1814 = vcmp.gt.f32.partialorder %v542, 0.0
    %v1815 = vsel %vm1813, 1, 0
    %v1816 = vsel %vm1814, 1, 0
    %vm1817 = vcmp.eq.s32.totalorder %v1815, 1
    %vm1818 = vcmp.eq.s32.totalorder %v1816, 1
    %vm1835 = vcmask 1041409
    %v1836 = vsel %vm1835, %v1282, %v1267
    %vm1837 = vcmask 1042434
    %v1838 = vsel %vm1837, %v1297, %v1836
    %vm1839 = vcmask 1043459
    %v1840 = vsel %vm1839, %v1312, %v1838
    %vm1841 = vcmask 1044484
    %v1842 = vsel %vm1841, %v1327, %v1840
    %vm1843 = vcmask 1045509
    %v1844 = vsel %vm1843, %v1342, %v1842
    %vm1845 = vcmask 1046534
    %v1846 = vsel %vm1845, %v1357, %v1844
    %vm1847 = vcmask 1047559
    %v1848 = vsel %vm1847, %v1372, %v1846
    %v1849 = vsel %vm1835, %v1402, %v1387
    %v1850 = vsel %vm1837, %v1417, %v1849
    %v1851 = vsel %vm1839, %v1432, %v1850
    %v1852 = vsel %vm1841, %v1447, %v1851
    %v1853 = vsel %vm1843, %v1462, %v1852
    %v1854 = vsel %vm1845, %v1477, %v1853
    %v1855 = vsel %vm1847, %v1492, %v1854
    %v1858 = vsel %vm1817, %v1848, 0.0
    %v1859 = vsel %vm1818, %v1855, 0.0
    %v1876 = vsel %vm1835, %v1602, %v1587
    %v1877 = vsel %vm1837, %v1617, %v1876
    %v1878 = vsel %vm1839, %v1632, %v1877
    %v1879 = vsel %vm1841, %v1647, %v1878
    %v1880 = vsel %vm1843, %v1662, %v1879
    %v1881 = vsel %vm1845, %v1677, %v1880
    %v1882 = vsel %vm1847, %v1692, %v1881
    %v1883 = vsel %vm1835, %v1722, %v1707
    %v1884 = vsel %vm1837, %v1737, %v1883
    %v1885 = vsel %vm1839, %v1752, %v1884
    %v1886 = vsel %vm1841, %v1767, %v1885
    %v1887 = vsel %vm1843, %v1782, %v1886
    %v1888 = vsel %vm1845, %v1797, %v1887
    %v1889 = vsel %vm1847, %v1812, %v1888
    %v1892 = vsel %vm1817, %v1882, 0.0
    %v1893 = vsel %vm1818, %v1889, 0.0
    %v1894 = vadd.f32 %v543, 1.0
    %v1895 = vadd.f32 %v544, 1.0
    %v1896 = vlog2.pop %v1894
    %v1897 = vmul.f32 %v1896, 0.6931472
    %v1898 = vlog2.pop %v1895
    %v1899 = vmul.f32 %v1898, 0.6931472
    %v1900 = vmul.f32 %v1897, 0.84718835
    %v1901 = vmul.f32 %v1899, 0.84718835
    %v1902 = vrcp.pop %v1897
    %v1903 = vmul.f32 1.1803751, %v1902
    %v1904 = vrcp.pop %v1899
    %v1905 = vmul.f32 1.1803751, %v1904
    %1908 = vrot.lane.b32.xlu0 %v1858, 64
    %v1909 = vpop.permute.xlu0 %1908
    %1910 = vrot.lane.b32.xlu0 %v1859, 64
    %v1911 = vpop.permute.xlu0 %1910
    %v1914 = vsel %vm574, %v661, %v1909
    %v1915 = vsel %vm574, %v662, %v1911
    %v1916 = vsel %vm574, %v1892, %v685
    %v1917 = vsel %vm574, %v1893, %v692
    %v1918 = vld [vmem:[%s12] sm:$0xff]
    %v1919 = vld [vmem:[%s12 + $0x8] sm:$0xff]
    %v1920 = vld [vmem:[%s12 + $0x10] sm:$0xff]
    %v1921 = vld [vmem:[%s12 + $0x18] sm:$0xff]
    %v1922 = vld [vmem:[%s12 + $0x20] sm:$0xff]
    %v1923 = vld [vmem:[%s12 + $0x28] sm:$0xff]
    %v1924 = vld [vmem:[%s12 + $0x30] sm:$0xff]
    %v1925 = vld [vmem:[%s12 + $0x38] sm:$0xff]
    %v1926 = vld [vmem:[%s12 + $0x40] sm:$0xff]
    %v1927 = vld [vmem:[%s12 + $0x48] sm:$0xff]
    %v1928 = vld [vmem:[%s12 + $0x50] sm:$0xff]
    %v1929 = vld [vmem:[%s12 + $0x58] sm:$0xff]
    %v1930 = vld [vmem:[%s12 + $0x60] sm:$0xff]
    %v1931 = vld [vmem:[%s12 + $0x68] sm:$0xff]
    %v1932 = vld [vmem:[%s12 + $0x70] sm:$0xff]
    %v1933 = vld [vmem:[%s12 + $0x78] sm:$0xff]
    %v1934 = vld [vmem:[%s12 + $0x80] sm:$0xff]
    %v1935 = vld [vmem:[%s12 + $0x88] sm:$0xff]
    %v1936 = vld [vmem:[%s12 + $0x90] sm:$0xff]
    %v1937 = vld [vmem:[%s12 + $0x98] sm:$0xff]
    %v1938 = vld [vmem:[%s12 + $0xa0] sm:$0xff]
    %v1939 = vld [vmem:[%s12 + $0xa8] sm:$0xff]
    %v1940 = vld [vmem:[%s12 + $0xb0] sm:$0xff]
    %v1941 = vld [vmem:[%s12 + $0xb8] sm:$0xff]
    %v1942 = vld [vmem:[%s12 + $0xc0] sm:$0xff]
    %v1943 = vld [vmem:[%s12 + $0xc8] sm:$0xff]
    %v1944 = vld [vmem:[%s12 + $0xd0] sm:$0xff]
    %v1945 = vld [vmem:[%s12 + $0xd8] sm:$0xff]
    %v1946 = vld [vmem:[%s12 + $0xe0] sm:$0xff]
    %v1947 = vld [vmem:[%s12 + $0xe8] sm:$0xff]
    %v1948 = vld [vmem:[%s12 + $0xf0] sm:$0xff]
    %v1949 = vld [vmem:[%s12 + $0xf8] sm:$0xff]
    %1950 = vmatprep.subr.mxu0 0.0
    %1951 = vmatpush1.msra.mxu0 %v1918
    %1952 = vmatprep.subr.mxu0 0.0
    %1953 = vmatpush1.msra.mxu0 %v1919
    %1954 = vmatprep.subr.mxu0 0.0
    %1955 = vmatpush1.msra.mxu0 %v1920
    %1956 = vmatprep.subr.mxu0 0.0
    %1957 = vmatpush1.msra.mxu0 %v1921
    %1958 = vmatprep.subr.mxu0 0.0
    %1959 = vmatpush1.msra.mxu0 %v1922
    %1960 = vmatprep.subr.mxu0 0.0
    %1961 = vmatpush1.msra.mxu0 %v1923
    %1962 = vmatprep.subr.mxu0 0.0
    %1963 = vmatpush1.msra.mxu0 %v1924
    %1964 = vmatprep.subr.mxu0 0.0
    %1965 = vmatpush1.msra.mxu0 %v1925
    %1966 = vmatprep.subr.mxu0 0.0
    %1967 = vmatpush1.msra.mxu0 %v1926
    %1968 = vmatprep.subr.mxu0 0.0
    %1969 = vmatpush1.msra.mxu0 %v1927
    %1970 = vmatprep.subr.mxu0 0.0
    %1971 = vmatpush1.msra.mxu0 %v1928
    %1972 = vmatprep.subr.mxu0 0.0
    %1973 = vmatpush1.msra.mxu0 %v1929
    %1974 = vmatprep.subr.mxu0 0.0
    %1975 = vmatpush1.msra.mxu0 %v1930
    %1976 = vmatprep.subr.mxu0 0.0
    %1977 = vmatpush1.msra.mxu0 %v1931
    %1978 = vmatprep.subr.mxu0 0.0
    %1979 = vmatpush1.msra.mxu0 %v1932
    %1980 = vmatprep.subr.mxu0 0.0
    %1981 = vmatpush1.msra.mxu0 %v1933
    %1982 = vmatprep.subr.mxu0 0.0
    %1983 = vmatpush1.msra.mxu0 %v1934
    %1984 = vmatprep.subr.mxu0 0.0
    %1985 = vmatpush1.msra.mxu0 %v1935
    %1986 = vmatprep.subr.mxu0 0.0
    %1987 = vmatpush1.msra.mxu0 %v1936
    %1988 = vmatprep.subr.mxu0 0.0
    %1989 = vmatpush1.msra.mxu0 %v1937
    %1990 = vmatprep.subr.mxu0 0.0
    %1991 = vmatpush1.msra.mxu0 %v1938
    %1992 = vmatprep.subr.mxu0 0.0
    %1993 = vmatpush1.msra.mxu0 %v1939
    %1994 = vmatprep.subr.mxu0 0.0
    %1995 = vmatpush1.msra.mxu0 %v1940
    %1996 = vmatprep.subr.mxu0 0.0
    %1997 = vmatpush1.msra.mxu0 %v1941
    %1998 = vmatprep.subr.mxu0 0.0
    %1999 = vmatpush1.msra.mxu0 %v1942
    %2000 = vmatprep.subr.mxu0 0.0
    %2001 = vmatpush1.msra.mxu0 %v1943
    %2002 = vmatprep.subr.mxu0 0.0
    %2003 = vmatpush1.msra.mxu0 %v1944
    %2004 = vmatprep.subr.mxu0 0.0
    %2005 = vmatpush1.msra.mxu0 %v1945
    %2006 = vmatprep.subr.mxu0 0.0
    %2007 = vmatpush1.msra.mxu0 %v1946
    %2008 = vmatprep.subr.mxu0 0.0
    %2009 = vmatpush1.msra.mxu0 %v1947
    %2010 = vmatprep.subr.mxu0 0.0
    %2011 = vmatpush1.msra.mxu0 %v1948
    %2012 = vmatprep.subr.mxu0 0.0
    %2013 = vmatpush1.msra.mxu0 %v1949
    %2014 = vmatprep.mubr.f32.mxu0 %v1916
    %2015 = vmatmul.mubr.f32.gmra.mrb[0].mxu0 %v1914
    %v2016 = vpop.f32.mrb[0].mxu0
    %v2017 = vadd.f32 0.0, %v2016
    %v2018 = vpop.f32.mrb[0].mxu0
    %2019 = vmatprep.mubr.f32.mxu0 %v1917
    %2020 = vmatmul.mubr.f32.gmra.mrb[0].mxu0 %v1915
    %v2021 = vpop.f32.mrb[0].mxu0
    %v2022 = vadd.f32 0.0, %v2021
    %v2023 = vpop.f32.mrb[0].mxu0
    %2024 = vdwg.mxu0
    %v2025 = vld [vmem:[%s11] sm:$0xff]
    %v2026 = vld [vmem:[%s13] sm:$0x1]
    %v2028 = vlaneseq
    %v2029 = vshrl.u32 %v2028, 7
    %v2030 = vsub.s32 0, %v2029
    %v2031 = vrot.slane %v2026, %v2030
    %2033 = vmatprep.subr.mxu0 0.0
    %2034 = vmatpush1.msra.mxu0 %v2025
    %2035 = vmatprep.subr.mxu0 0.0
    %2036 = vmatpush1.msra.mxu0 0.0
    %2037 = vmatprep.subr.mxu0 0.0
    %2038 = vmatpush1.msra.mxu0 0.0
    %2039 = vmatprep.subr.mxu0 0.0
    %2040 = vmatpush1.msra.mxu0 0.0
    %2041 = vmatprep.subr.mxu0 0.0
    %2042 = vmatpush1.msra.mxu0 0.0
    %2043 = vmatprep.subr.mxu0 0.0
    %2044 = vmatpush1.msra.mxu0 0.0
    %2045 = vmatprep.subr.mxu0 0.0
    %2046 = vmatpush1.msra.mxu0 0.0
    %2047 = vmatprep.subr.mxu0 0.0
    %2048 = vmatpush1.msra.mxu0 0.0
    %2049 = vmatprep.subr.mxu0 0.0
    %2050 = vmatpush1.msra.mxu0 0.0
    %2051 = vmatprep.subr.mxu0 0.0
    %2052 = vmatpush1.msra.mxu0 0.0
    %2053 = vmatprep.subr.mxu0 0.0
    %2054 = vmatpush1.msra.mxu0 0.0
    %2055 = vmatprep.subr.mxu0 0.0
    %2056 = vmatpush1.msra.mxu0 0.0
    %2057 = vmatprep.subr.mxu0 0.0
    %2058 = vmatpush1.msra.mxu0 0.0
    %2059 = vmatprep.subr.mxu0 0.0
    %2060 = vmatpush1.msra.mxu0 0.0
    %2061 = vmatprep.subr.mxu0 0.0
    %2062 = vmatpush1.msra.mxu0 0.0
    %2063 = vmatprep.subr.mxu0 0.0
    %2064 = vmatpush1.msra.mxu0 0.0
    %2065 = vmatprep.subr.mxu0 0.0
    %2066 = vmatpush1.msra.mxu0 0.0
    %2067 = vmatprep.subr.mxu0 0.0
    %2068 = vmatpush1.msra.mxu0 0.0
    %2069 = vmatprep.subr.mxu0 0.0
    %2070 = vmatpush1.msra.mxu0 0.0
    %2071 = vmatprep.subr.mxu0 0.0
    %2072 = vmatpush1.msra.mxu0 0.0
    %2073 = vmatprep.subr.mxu0 0.0
    %2074 = vmatpush1.msra.mxu0 0.0
    %2075 = vmatprep.subr.mxu0 0.0
    %2076 = vmatpush1.msra.mxu0 0.0
    %2077 = vmatprep.subr.mxu0 0.0
    %2078 = vmatpush1.msra.mxu0 0.0
    %2079 = vmatprep.subr.mxu0 0.0
    %2080 = vmatpush1.msra.mxu0 0.0
    %2081 = vmatprep.subr.mxu0 0.0
    %2082 = vmatpush1.msra.mxu0 0.0
    %2083 = vmatprep.subr.mxu0 0.0
    %2084 = vmatpush1.msra.mxu0 0.0
    %2085 = vmatprep.subr.mxu0 0.0
    %2086 = vmatpush1.msra.mxu0 0.0
    %2087 = vmatprep.subr.mxu0 0.0
    %2088 = vmatpush1.msra.mxu0 0.0
    %2089 = vmatprep.subr.mxu0 0.0
    %2090 = vmatpush1.msra.mxu0 0.0
    %2091 = vmatprep.subr.mxu0 0.0
    %2092 = vmatpush1.msra.mxu0 0.0
    %2093 = vmatprep.subr.mxu0 0.0
    %2094 = vmatpush1.msra.mxu0 0.0
    %2095 = vmatprep.subr.mxu0 0.0
    %2096 = vmatpush1.msra.mxu0 0.0
    %2097 = vmatprep.mubr.f32.mxu0 0.0
    %2098 = vmatmul.mubr.f32.gmra.mrb[0].mxu0 %v98
    %v2099 = vpop.f32.mrb[0].mxu0
    %v2100 = vadd.f32 %v2031, %v2099
    %v2101 = vpop.f32.mrb[0].mxu0
    %2102 = vmatprep.mubr.f32.mxu0 0.0
    %2103 = vmatmul.mubr.f32.gmra.mrb[0].mxu0 %v101
    %v2104 = vpop.f32.mrb[0].mxu0
    %v2105 = vadd.f32 %v2031, %v2104
    %v2106 = vpop.f32.mrb[0].mxu0
    %2107 = vdwg.mxu0
    %v2108 = vadd.f32 %v2100, %v2017
    %v2109 = vadd.f32 %v2105, %v2022
    %v2110 = vmul.f32 %v1900, %v2017
    %v2111 = vmul.f32 %v1901, %v2022
    %2114 = vrot.lane.b32.xlu0 %v2110, 96
    %v2115 = vpop.permute.xlu0 %2114
    %2116 = vrot.lane.b32.xlu0 %v2111, 96
    %v2117 = vpop.permute.xlu0 %2116
    %v2120 = vadd.f32 %v2108, %v2115
    %v2121 = vadd.f32 %v2109, %v2117
    %v2122 = vmul.f32 %v1903, %v2017
    %v2123 = vmul.f32 %v1905, %v2022
    %2126 = vrot.lane.b32.xlu0 %v2122, 64
    %v2127 = vpop.permute.xlu0 %2126
    %2128 = vrot.lane.b32.xlu0 %v2123, 64
    %v2129 = vpop.permute.xlu0 %2128
    %v2132 = vadd.f32 %v2120, %v2127
    %v2133 = vadd.f32 %v2121, %v2129
    %v2134 = vld [vmem:[%s14] sm:$0xff]
    %v2135 = vld [vmem:[%s14 + $0x8] sm:$0xff]
    %v2136 = vld [vmem:[%s14 + $0x10] sm:$0xff]
    %v2137 = vld [vmem:[%s14 + $0x18] sm:$0xff]
    %v2138 = vld [vmem:[%s15] sm:$0x1]
    %v2140 = vlaneseq
    %v2141 = vshrl.u32 %v2140, 7
    %v2142 = vsub.s32 0, %v2141
    %v2143 = vrot.slane %v2138, %v2142
    %vm2145 = vcmask 261120
    %v2147 = vsel %vm2145, %v2132, 0
    %v2150 = vsel %vm2145, %v2133, 0
    %2152 = vmatprep.subr.mxu0 0.0
    %2153 = vmatpush1.msra.mxu0 %v2134
    %2154 = vmatprep.subr.mxu0 0.0
    %2155 = vmatpush1.msra.mxu0 %v2135
    %2156 = vmatprep.subr.mxu0 0.0
    %2157 = vmatpush1.msra.mxu0 %v2136
    %2158 = vmatprep.subr.mxu0 0.0
    %2159 = vmatpush1.msra.mxu0 %v2137
    %2160 = vmatprep.subr.mxu0 0.0
    %2161 = vmatpush1.msra.mxu0 0.0
    %2162 = vmatprep.subr.mxu0 0.0
    %2163 = vmatpush1.msra.mxu0 0.0
    %2164 = vmatprep.subr.mxu0 0.0
    %2165 = vmatpush1.msra.mxu0 0.0
    %2166 = vmatprep.subr.mxu0 0.0
    %2167 = vmatpush1.msra.mxu0 0.0
    %2168 = vmatprep.subr.mxu0 0.0
    %2169 = vmatpush1.msra.mxu0 0.0
    %2170 = vmatprep.subr.mxu0 0.0
    %2171 = vmatpush1.msra.mxu0 0.0
    %2172 = vmatprep.subr.mxu0 0.0
    %2173 = vmatpush1.msra.mxu0 0.0
    %2174 = vmatprep.subr.mxu0 0.0
    %2175 = vmatpush1.msra.mxu0 0.0
    %2176 = vmatprep.subr.mxu0 0.0
    %2177 = vmatpush1.msra.mxu0 0.0
    %2178 = vmatprep.subr.mxu0 0.0
    %2179 = vmatpush1.msra.mxu0 0.0
    %2180 = vmatprep.subr.mxu0 0.0
    %2181 = vmatpush1.msra.mxu0 0.0
    %2182 = vmatprep.subr.mxu0 0.0
    %2183 = vmatpush1.msra.mxu0 0.0
    %2184 = vmatprep.subr.mxu0 0.0
    %2185 = vmatpush1.msra.mxu0 0.0
    %2186 = vmatprep.subr.mxu0 0.0
    %2187 = vmatpush1.msra.mxu0 0.0
    %2188 = vmatprep.subr.mxu0 0.0
    %2189 = vmatpush1.msra.mxu0 0.0
    %2190 = vmatprep.subr.mxu0 0.0
    %2191 = vmatpush1.msra.mxu0 0.0
    %2192 = vmatprep.subr.mxu0 0.0
    %2193 = vmatpush1.msra.mxu0 0.0
    %2194 = vmatprep.subr.mxu0 0.0
    %2195 = vmatpush1.msra.mxu0 0.0
    %2196 = vmatprep.subr.mxu0 0.0
    %2197 = vmatpush1.msra.mxu0 0.0
    %2198 = vmatprep.subr.mxu0 0.0
    %2199 = vmatpush1.msra.mxu0 0.0
    %2200 = vmatprep.subr.mxu0 0.0
    %2201 = vmatpush1.msra.mxu0 0.0
    %2202 = vmatprep.subr.mxu0 0.0
    %2203 = vmatpush1.msra.mxu0 0.0
    %2204 = vmatprep.subr.mxu0 0.0
    %2205 = vmatpush1.msra.mxu0 0.0
    %2206 = vmatprep.subr.mxu0 0.0
    %2207 = vmatpush1.msra.mxu0 0.0
    %2208 = vmatprep.subr.mxu0 0.0
    %2209 = vmatpush1.msra.mxu0 0.0
    %2210 = vmatprep.subr.mxu0 0.0
    %2211 = vmatpush1.msra.mxu0 0.0
    %2212 = vmatprep.subr.mxu0 0.0
    %2213 = vmatpush1.msra.mxu0 0.0
    %2214 = vmatprep.subr.mxu0 0.0
    %2215 = vmatpush1.msra.mxu0 0.0
    %2216 = vmatprep.mubr.f32.mxu0 0.0
    %2217 = vmatmul.mubr.f32.gmra.mrb[0].mxu0 %v2147
    %v2218 = vpop.f32.mrb[0].mxu0
    %v2219 = vadd.f32 %v2143, %v2218
    %v2220 = vpop.f32.mrb[0].mxu0
    %2221 = vmatprep.mubr.f32.mxu0 0.0
    %2222 = vmatmul.mubr.f32.gmra.mrb[0].mxu0 %v2150
    %v2223 = vpop.f32.mrb[0].mxu0
    %v2224 = vadd.f32 %v2143, %v2223
    %v2225 = vpop.f32.mrb[0].mxu0
    %2226 = vdwg.mxu0
    %v2227 = vsel %vm2145, %v2219, 0.0
    %v2228 = vsel %vm2145, %v2224, 0.0
    %v2229 = vadd.f32 %v2227, %v2228
    %v2230 = vrot.slane %v2229, 4
    %v2231 = vadd.f32 %v2229, %v2230
    %v2232 = vrot.slane %v2231, 2
    %v2233 = vadd.f32 %v2231, %v2232
    %v2234 = vrot.slane %v2233, 1
    %v2235 = vadd.f32 %v2233, %v2234
    %v2236 = vrcp.pop 16.0
    %v2237 = vmul.f32 %v2235, %v2236
    %v2238 = vsub.f32 %v2219, %v2237
    %v2239 = vsub.f32 %v2224, %v2237
    %v2240 = vmul.f32 %v2238, %v2238
    %v2241 = vmul.f32 %v2239, %v2239
    %v2242 = vsel %vm2145, %v2240, 0.0
    %v2243 = vsel %vm2145, %v2241, 0.0
    %v2244 = vadd.f32 %v2242, %v2243
    %v2245 = vrot.slane %v2244, 4
    %v2246 = vadd.f32 %v2244, %v2245
    %v2247 = vrot.slane %v2246, 2
    %v2248 = vadd.f32 %v2246, %v2247
    %v2249 = vrot.slane %v2248, 1
    %v2250 = vadd.f32 %v2248, %v2249
    %v2251 = vmul.f32 %v2250, %v2236
    %v2252 = vadd.f32 %v2251, 1e-05
    %v2253 = vrsqrt.pop %v2252
    %v2254 = vmul.f32 %v2238, %v2253
    %v2255 = vmul.f32 %v2239, %v2253
    %v2256 = vld [vmem:[%s16] sm:$0x1]
    %v2258 = vlaneseq
    %v2259 = vshrl.u32 %v2258, 7
    %v2260 = vsub.s32 0, %v2259
    %v2261 = vrot.slane %v2256, %v2260
    %v2263 = vmul.f32 %v2254, %v2261
    %v2264 = vmul.f32 %v2255, %v2261
    %v2265 = vld [vmem:[%s17] sm:$0x1]
    %v2267 = vlaneseq
    %v2268 = vshrl.u32 %v2267, 7
    %v2269 = vsub.s32 0, %v2268
    %v2270 = vrot.slane %v2265, %v2269
    %v2272 = vadd.f32 %v2263, %v2270
    %v2273 = vadd.f32 %v2264, %v2270
    %v2274 = vmax.f32 %v2272, 0.0
    %v2275 = vmax.f32 %v2273, 0.0
    %v2276 = vld [vmem:[%s18] sm:$0x3]
    %v2278 = vsel %vm308, %v2276, 0
    %2280 = vmatprep.subr.mxu0 0.0
    %2281 = vmatpush1.msra.mxu0 %v2274
    %2282 = vmatprep.subr.mxu0 0.0
    %2283 = vmatpush1.msra.mxu0 %v2275
    %2284 = vmatprep.subr.mxu0 0.0
    %2285 = vmatpush1.msra.mxu0 0.0
    %2286 = vmatprep.subr.mxu0 0.0
    %2287 = vmatpush1.msra.mxu0 0.0
    %2288 = vmatprep.subr.mxu0 0.0
    %2289 = vmatpush1.msra.mxu0 0.0
    %2290 = vmatprep.subr.mxu0 0.0
    %2291 = vmatpush1.msra.mxu0 0.0
    %2292 = vmatprep.subr.mxu0 0.0
    %2293 = vmatpush1.msra.mxu0 0.0
    %2294 = vmatprep.subr.mxu0 0.0
    %2295 = vmatpush1.msra.mxu0 0.0
    %2296 = vmatprep.subr.mxu0 0.0
    %2297 = vmatpush1.msra.mxu0 0.0
    %2298 = vmatprep.subr.mxu0 0.0
    %2299 = vmatpush1.msra.mxu0 0.0
    %2300 = vmatprep.subr.mxu0 0.0
    %2301 = vmatpush1.msra.mxu0 0.0
    %2302 = vmatprep.subr.mxu0 0.0
    %2303 = vmatpush1.msra.mxu0 0.0
    %2304 = vmatprep.subr.mxu0 0.0
    %2305 = vmatpush1.msra.mxu0 0.0
    %2306 = vmatprep.subr.mxu0 0.0
    %2307 = vmatpush1.msra.mxu0 0.0
    %2308 = vmatprep.subr.mxu0 0.0
    %2309 = vmatpush1.msra.mxu0 0.0
    %2310 = vmatprep.subr.mxu0 0.0
    %2311 = vmatpush1.msra.mxu0 0.0
    %2312 = vmatprep.subr.mxu0 0.0
    %2313 = vmatpush1.msra.mxu0 0.0
    %2314 = vmatprep.subr.mxu0 0.0
    %2315 = vmatpush1.msra.mxu0 0.0
    %2316 = vmatprep.subr.mxu0 0.0
    %2317 = vmatpush1.msra.mxu0 0.0
    %2318 = vmatprep.subr.mxu0 0.0
    %2319 = vmatpush1.msra.mxu0 0.0
    %2320 = vmatprep.subr.mxu0 0.0
    %2321 = vmatpush1.msra.mxu0 0.0
    %2322 = vmatprep.subr.mxu0 0.0
    %2323 = vmatpush1.msra.mxu0 0.0
    %2324 = vmatprep.subr.mxu0 0.0
    %2325 = vmatpush1.msra.mxu0 0.0
    %2326 = vmatprep.subr.mxu0 0.0
    %2327 = vmatpush1.msra.mxu0 0.0
    %2328 = vmatprep.subr.mxu0 0.0
    %2329 = vmatpush1.msra.mxu0 0.0
    %2330 = vmatprep.subr.mxu0 0.0
    %2331 = vmatpush1.msra.mxu0 0.0
    %2332 = vmatprep.subr.mxu0 0.0
    %2333 = vmatpush1.msra.mxu0 0.0
    %2334 = vmatprep.subr.mxu0 0.0
    %2335 = vmatpush1.msra.mxu0 0.0
    %2336 = vmatprep.subr.mxu0 0.0
    %2337 = vmatpush1.msra.mxu0 0.0
    %2338 = vmatprep.subr.mxu0 0.0
    %2339 = vmatpush1.msra.mxu0 0.0
    %2340 = vmatprep.subr.mxu0 0.0
    %2341 = vmatpush1.msra.mxu0 0.0
    %2342 = vmatprep.subr.mxu0 0.0
    %2343 = vmatpush1.msra.mxu0 0.0
    %2344 = vmatprep.mubr.f32.mxu0 0.0
    %2345 = vmatmul.mubr.f32.gmra.mrb[0].mxu0 %v2278
    %v2346 = vpop.f32.mrb[0].mxu0
    %v2347 = vadd.f32 0.0, %v2346
    %v2348 = vpop.f32.mrb[0].mxu0
    %2349 = vdwg.mxu0
    %v2350 = vld [vmem:[%s19] sm:$0xff]
    %v2351 = vld [vmem:[%s19 + $0x8] sm:$0xff]
    %v2352 = vld [vmem:[%s19 + $0x10] sm:$0xff]
    %v2353 = vld [vmem:[%s19 + $0x18] sm:$0xff]
    %v2354 = vld [vmem:[%s20] sm:$0x1]
    %v2356 = vlaneseq
    %v2357 = vshrl.u32 %v2356, 7
    %v2358 = vsub.s32 0, %v2357
    %v2359 = vrot.slane %v2354, %v2358
    %v2362 = vsel %vm2145, %v2347, 0
    %2364 = vmatprep.subr.mxu0 0.0
    %2365 = vmatpush1.msra.mxu0 %v2350
    %2366 = vmatprep.subr.mxu0 0.0
    %2367 = vmatpush1.msra.mxu0 %v2351
    %2368 = vmatprep.subr.mxu0 0.0
    %2369 = vmatpush1.msra.mxu0 %v2352
    %2370 = vmatprep.subr.mxu0 0.0
    %2371 = vmatpush1.msra.mxu0 %v2353
    %2372 = vmatprep.subr.mxu0 0.0
    %2373 = vmatpush1.msra.mxu0 0.0
    %2374 = vmatprep.subr.mxu0 0.0
    %2375 = vmatpush1.msra.mxu0 0.0
    %2376 = vmatprep.subr.mxu0 0.0
    %2377 = vmatpush1.msra.mxu0 0.0
    %2378 = vmatprep.subr.mxu0 0.0
    %2379 = vmatpush1.msra.mxu0 0.0
    %2380 = vmatprep.subr.mxu0 0.0
    %2381 = vmatpush1.msra.mxu0 0.0
    %2382 = vmatprep.subr.mxu0 0.0
    %2383 = vmatpush1.msra.mxu0 0.0
    %2384 = vmatprep.subr.mxu0 0.0
    %2385 = vmatpush1.msra.mxu0 0.0
    %2386 = vmatprep.subr.mxu0 0.0
    %2387 = vmatpush1.msra.mxu0 0.0
    %2388 = vmatprep.subr.mxu0 0.0
    %2389 = vmatpush1.msra.mxu0 0.0
    %2390 = vmatprep.subr.mxu0 0.0
    %2391 = vmatpush1.msra.mxu0 0.0
    %2392 = vmatprep.subr.mxu0 0.0
    %2393 = vmatpush1.msra.mxu0 0.0
    %2394 = vmatprep.subr.mxu0 0.0
    %2395 = vmatpush1.msra.mxu0 0.0
    %2396 = vmatprep.subr.mxu0 0.0
    %2397 = vmatpush1.msra.mxu0 0.0
    %2398 = vmatprep.subr.mxu0 0.0
    %2399 = vmatpush1.msra.mxu0 0.0
    %2400 = vmatprep.subr.mxu0 0.0
    %2401 = vmatpush1.msra.mxu0 0.0
    %2402 = vmatprep.subr.mxu0 0.0
    %2403 = vmatpush1.msra.mxu0 0.0
    %2404 = vmatprep.subr.mxu0 0.0
    %2405 = vmatpush1.msra.mxu0 0.0
    %2406 = vmatprep.subr.mxu0 0.0
    %2407 = vmatpush1.msra.mxu0 0.0
    %2408 = vmatprep.subr.mxu0 0.0
    %2409 = vmatpush1.msra.mxu0 0.0
    %2410 = vmatprep.subr.mxu0 0.0
    %2411 = vmatpush1.msra.mxu0 0.0
    %2412 = vmatprep.subr.mxu0 0.0
    %2413 = vmatpush1.msra.mxu0 0.0
    %2414 = vmatprep.subr.mxu0 0.0
    %2415 = vmatpush1.msra.mxu0 0.0
    %2416 = vmatprep.subr.mxu0 0.0
    %2417 = vmatpush1.msra.mxu0 0.0
    %2418 = vmatprep.subr.mxu0 0.0
    %2419 = vmatpush1.msra.mxu0 0.0
    %2420 = vmatprep.subr.mxu0 0.0
    %2421 = vmatpush1.msra.mxu0 0.0
    %2422 = vmatprep.subr.mxu0 0.0
    %2423 = vmatpush1.msra.mxu0 0.0
    %2424 = vmatprep.subr.mxu0 0.0
    %2425 = vmatpush1.msra.mxu0 0.0
    %2426 = vmatprep.subr.mxu0 0.0
    %2427 = vmatpush1.msra.mxu0 0.0
    %2428 = vmatprep.mubr.f32.mxu0 0.0
    %2429 = vmatmul.mubr.f32.gmra.mrb[0].mxu0 %v2362
    %v2430 = vpop.f32.mrb[0].mxu0
    %v2431 = vadd.f32 %v2359, %v2430
    %v2432 = vpop.f32.mrb[0].mxu0
    %2433 = vdwg.mxu0
    %v2434 = vmax.f32 %v2431, 0.0
    %v2435 = vld [vmem:[%s21] sm:$0xff]
    %v2436 = vld [vmem:[%s21 + $0x8] sm:$0xff]
    %v2437 = vld [vmem:[%s22] sm:$0x1]
    %v2439 = vlaneseq
    %v2440 = vshrl.u32 %v2439, 7
    %v2441 = vsub.s32 0, %v2440
    %v2442 = vrot.slane %v2437, %v2441
    %v2445 = vsel %vm308, %v2434, 0
    %2447 = vmatprep.subr.mxu0 0.0
    %2448 = vmatpush1.msra.mxu0 %v2435
    %2449 = vmatprep.subr.mxu0 0.0
    %2450 = vmatpush1.msra.mxu0 %v2436
    %2451 = vmatprep.subr.mxu0 0.0
    %2452 = vmatpush1.msra.mxu0 0.0
    %2453 = vmatprep.subr.mxu0 0.0
    %2454 = vmatpush1.msra.mxu0 0.0
    %2455 = vmatprep.subr.mxu0 0.0
    %2456 = vmatpush1.msra.mxu0 0.0
    %2457 = vmatprep.subr.mxu0 0.0
    %2458 = vmatpush1.msra.mxu0 0.0
    %2459 = vmatprep.subr.mxu0 0.0
    %2460 = vmatpush1.msra.mxu0 0.0
    %2461 = vmatprep.subr.mxu0 0.0
    %2462 = vmatpush1.msra.mxu0 0.0
    %2463 = vmatprep.subr.mxu0 0.0
    %2464 = vmatpush1.msra.mxu0 0.0
    %2465 = vmatprep.subr.mxu0 0.0
    %2466 = vmatpush1.msra.mxu0 0.0
    %2467 = vmatprep.subr.mxu0 0.0
    %2468 = vmatpush1.msra.mxu0 0.0
    %2469 = vmatprep.subr.mxu0 0.0
    %2470 = vmatpush1.msra.mxu0 0.0
    %2471 = vmatprep.subr.mxu0 0.0
    %2472 = vmatpush1.msra.mxu0 0.0
    %2473 = vmatprep.subr.mxu0 0.0
    %2474 = vmatpush1.msra.mxu0 0.0
    %2475 = vmatprep.subr.mxu0 0.0
    %2476 = vmatpush1.msra.mxu0 0.0
    %2477 = vmatprep.subr.mxu0 0.0
    %2478 = vmatpush1.msra.mxu0 0.0
    %2479 = vmatprep.subr.mxu0 0.0
    %2480 = vmatpush1.msra.mxu0 0.0
    %2481 = vmatprep.subr.mxu0 0.0
    %2482 = vmatpush1.msra.mxu0 0.0
    %2483 = vmatprep.subr.mxu0 0.0
    %2484 = vmatpush1.msra.mxu0 0.0
    %2485 = vmatprep.subr.mxu0 0.0
    %2486 = vmatpush1.msra.mxu0 0.0
    %2487 = vmatprep.subr.mxu0 0.0
    %2488 = vmatpush1.msra.mxu0 0.0
    %2489 = vmatprep.subr.mxu0 0.0
    %2490 = vmatpush1.msra.mxu0 0.0
    %2491 = vmatprep.subr.mxu0 0.0
    %2492 = vmatpush1.msra.mxu0 0.0
    %2493 = vmatprep.subr.mxu0 0.0
    %2494 = vmatpush1.msra.mxu0 0.0
    %2495 = vmatprep.subr.mxu0 0.0
    %2496 = vmatpush1.msra.mxu0 0.0
    %2497 = vmatprep.subr.mxu0 0.0
    %2498 = vmatpush1.msra.mxu0 0.0
    %2499 = vmatprep.subr.mxu0 0.0
    %2500 = vmatpush1.msra.mxu0 0.0
    %2501 = vmatprep.subr.mxu0 0.0
    %2502 = vmatpush1.msra.mxu0 0.0
    %2503 = vmatprep.subr.mxu0 0.0
    %2504 = vmatpush1.msra.mxu0 0.0
    %2505 = vmatprep.subr.mxu0 0.0
    %2506 = vmatpush1.msra.mxu0 0.0
    %2507 = vmatprep.subr.mxu0 0.0
    %2508 = vmatpush1.msra.mxu0 0.0
    %2509 = vmatprep.subr.mxu0 0.0
    %2510 = vmatpush1.msra.mxu0 0.0
    %2511 = vmatprep.mubr.f32.mxu0 0.0
    %2512 = vmatmul.mubr.f32.gmra.mrb[0].mxu0 %v2445
    %v2513 = vpop.f32.mrb[0].mxu0
    %v2514 = vadd.f32 %v2442, %v2513
    %v2515 = vpop.f32.mrb[0].mxu0
    %2516 = vdwg.mxu0
    %v2517 = vmax.f32 %v2514, 0.0
    %v2518 = vld [vmem:[%s23] sm:$0xff]
    %v2519 = vld [vmem:[%s24] sm:$0x1]
    %v2521 = vlaneseq
    %v2522 = vshrl.u32 %v2521, 7
    %v2523 = vsub.s32 0, %v2522
    %v2524 = vrot.slane %v2519, %v2523
    %v2527 = vsel %vm96, %v2517, 0
    %2529 = vmatprep.subr.mxu0 0.0
    %2530 = vmatpush1.msra.mxu0 %v2518
    %2531 = vmatprep.subr.mxu0 0.0
    %2532 = vmatpush1.msra.mxu0 0.0
    %2533 = vmatprep.subr.mxu0 0.0
    %2534 = vmatpush1.msra.mxu0 0.0
    %2535 = vmatprep.subr.mxu0 0.0
    %2536 = vmatpush1.msra.mxu0 0.0
    %2537 = vmatprep.subr.mxu0 0.0
    %2538 = vmatpush1.msra.mxu0 0.0
    %2539 = vmatprep.subr.mxu0 0.0
    %2540 = vmatpush1.msra.mxu0 0.0
    %2541 = vmatprep.subr.mxu0 0.0
    %2542 = vmatpush1.msra.mxu0 0.0
    %2543 = vmatprep.subr.mxu0 0.0
    %2544 = vmatpush1.msra.mxu0 0.0
    %2545 = vmatprep.subr.mxu0 0.0
    %2546 = vmatpush1.msra.mxu0 0.0
    %2547 = vmatprep.subr.mxu0 0.0
    %2548 = vmatpush1.msra.mxu0 0.0
    %2549 = vmatprep.subr.mxu0 0.0
    %2550 = vmatpush1.msra.mxu0 0.0
    %2551 = vmatprep.subr.mxu0 0.0
    %2552 = vmatpush1.msra.mxu0 0.0
    %2553 = vmatprep.subr.mxu0 0.0
    %2554 = vmatpush1.msra.mxu0 0.0
    %2555 = vmatprep.subr.mxu0 0.0
    %2556 = vmatpush1.msra.mxu0 0.0
    %2557 = vmatprep.subr.mxu0 0.0
    %2558 = vmatpush1.msra.mxu0 0.0
    %2559 = vmatprep.subr.mxu0 0.0
    %2560 = vmatpush1.msra.mxu0 0.0
    %2561 = vmatprep.subr.mxu0 0.0
    %2562 = vmatpush1.msra.mxu0 0.0
    %2563 = vmatprep.subr.mxu0 0.0
    %2564 = vmatpush1.msra.mxu0 0.0
    %2565 = vmatprep.subr.mxu0 0.0
    %2566 = vmatpush1.msra.mxu0 0.0
    %2567 = vmatprep.subr.mxu0 0.0
    %2568 = vmatpush1.msra.mxu0 0.0
    %2569 = vmatprep.subr.mxu0 0.0
    %2570 = vmatpush1.msra.mxu0 0.0
    %2571 = vmatprep.subr.mxu0 0.0
    %2572 = vmatpush1.msra.mxu0 0.0
    %2573 = vmatprep.subr.mxu0 0.0
    %2574 = vmatpush1.msra.mxu0 0.0
    %2575 = vmatprep.subr.mxu0 0.0
    %2576 = vmatpush1.msra.mxu0 0.0
    %2577 = vmatprep.subr.mxu0 0.0
    %2578 = vmatpush1.msra.mxu0 0.0
    %2579 = vmatprep.subr.mxu0 0.0
    %2580 = vmatpush1.msra.mxu0 0.0
    %2581 = vmatprep.subr.mxu0 0.0
    %2582 = vmatpush1.msra.mxu0 0.0
    %2583 = vmatprep.subr.mxu0 0.0
    %2584 = vmatpush1.msra.mxu0 0.0
    %2585 = vmatprep.subr.mxu0 0.0
    %2586 = vmatpush1.msra.mxu0 0.0
    %2587 = vmatprep.subr.mxu0 0.0
    %2588 = vmatpush1.msra.mxu0 0.0
    %2589 = vmatprep.subr.mxu0 0.0
    %2590 = vmatpush1.msra.mxu0 0.0
    %2591 = vmatprep.subr.mxu0 0.0
    %2592 = vmatpush1.msra.mxu0 0.0
    %2593 = vmatprep.mubr.f32.mxu0 0.0
    %2594 = vmatmul.mubr.f32.gmra.mrb[0].mxu0 %v2527
    %v2595 = vpop.f32.mrb[0].mxu0
    %v2596 = vadd.f32 %v2524, %v2595
    %v2597 = vpop.f32.mrb[0].mxu0
    %2598 = vdwg.mxu0
    %vm2599 = vcmask 9216
    %v2600 = vsel %vm2599, %v2596, -inf
    %2601 = vmax.xlane.f32.xlu0 %v2600
    %v2602 = vpop.xlane.xlu0 %2601
    %v2603 = vsub.f32 %v2596, %v2602
    %v2604 = vmul.f32 %v2603, 1.442695
    %v2605 = vpow.pop %v2604
    %v2606 = vsel %vm2599, %v2605, 0.0
    %2607 = vadd.xlane.f32.xlu0 %v2606
    %v2608 = vpop.xlane.xlu0 %2607
    %v2609 = vlog2.pop %v2608
    %v2610 = vmul.f32 %v2609, 0.6931472
    %v2611 = vadd.f32 %v2602, %v2610
    %v2612 = vsub.f32 %v2596, %v2611
    %2613 = vst.msk [vmem:[#allocation2] sm:$0x3] %vm2599, %v2612
    // Predicated region
    $region102: #{tpu_custom_call.1} parent=1 // pred_check
      _
    $region103: #{tpu_custom_call.1} parent=1 // pred_check_branch
      %2615 = sbr.rel (0) target = $region105
    $region104: #{tpu_custom_call.1} parent=1 // pred_region
      %s2617 = ssub.s32 32, 32
      %2618 = vsyncadd [#allocation3], %s2617
      %s2620 = sshll.u32 [#allocation2], 4
      %s2621 = int_to_ptr.vmem [resolvable:$true] %s2620
      %2623 = dma.vmem_to_hbm [thread:$0]  %s2621, 32, %s25, [#allocation3]
    $region105: #{tpu_custom_call.1} parent=1 // pred_fallthru
      _
    // Predicated region
    $region106: #{tpu_custom_call.1} parent=1 // pred_check
      _
    $region107: #{tpu_custom_call.1} parent=1 // pred_check_branch
      %2625 = sbr.rel (0) target = $region109
    $region108: #{tpu_custom_call.1} parent=1 // pred_region
      %2626 = dma.done [#allocation3], 32
    $region109: #{tpu_custom_call.1} parent=1 // pred_fallthru
      _
    %2627 = vsyncpa [#allocation3], 1

</llo_original>
